<compile_context>
chip_gen: v7x
topology: tpu7x:2x2x1
jax: 0.10.0
libtpu: 0.0.40
codegen_flags: <defaults>
</compile_context>

<pallas_src>
import functools

import jax
import jax.numpy as jnp
from jax import lax
from jax.experimental import pallas as pl
from jax.experimental.pallas import tpu as pltpu

LN_EPS = 1e-5  # torch.nn.LayerNorm default


def _layernorm(x, g, b):
    mu = jnp.mean(x, axis=-1, keepdims=True)
    var = jnp.mean((x - mu) ** 2, axis=-1, keepdims=True)
    return (x - mu) * lax.rsqrt(var + LN_EPS) * g + b


def transformer_stack_kernel(
        x_ref, ln1g_ref, ln1b_ref, wq_ref, wkv_ref, wp_ref, bp_ref,
        ln2g_ref, ln2b_ref, w1_ref, b1_ref, w2_ref, b2_ref,
        o_ref, x_vmem, attn_vmem, *, num_heads):
    layer = pl.program_id(1)
    Bt, N, C = x_vmem.shape
    H = num_heads
    D = C // H
    M = Bt * N

    # Layer 0: pull this batch tile's residual stream into resident f32 VMEM.
    @pl.when(layer == 0)
    def _():
        x_vmem[...] = x_ref[...].astype(jnp.float32)

    x = x_vmem[...].reshape(M, C)                       # f32 residual stream

    # ---------- attention branch: x + project(attn(LN1(x))) ----------
    xn = _layernorm(x, ln1g_ref[0], ln1b_ref[0])
    xn_b = xn.astype(jnp.bfloat16)
    # 1/sqrt(D) is pre-folded into Wq on the host (stack_params).
    q = jnp.dot(xn_b, wq_ref[0], preferred_element_type=jnp.float32)    # (M, C)
    kv = jnp.dot(xn_b, wkv_ref[0], preferred_element_type=jnp.float32)  # (M, 2C)

    # Per-(batch-row, head) softmax attention over the N keys of the same
    # sequence.  Head outputs land directly in their lane slice of the staging
    # buffer, so the output projection below is one full-width matmul.
    # TODO(synk): for realistic N (>=128) switch to a flash-style key-tiled
    # online softmax with a head-batched dot_general instead of this static
    # per-head loop (kept here because in-kernel (N,H,D)->(H,N,D) transposes
    # are not reliably supported by the Mosaic lowering at these tiny dims).
    for b in range(Bt):                                 # static unroll
        r0 = b * N
        for h in range(H):                              # static unroll
            c0 = h * D
            qh = q[r0:r0 + N, c0:c0 + D].astype(jnp.bfloat16)           # (N, D)
            kh = kv[r0:r0 + N, c0:c0 + D].astype(jnp.bfloat16)          # keys
            vh = kv[r0:r0 + N, C + c0:C + c0 + D].astype(jnp.bfloat16)  # values
            # q @ k^T without an explicit transpose: contract last dims.
            s = lax.dot_general(qh, kh, (((1,), (1,)), ((), ())),
                                preferred_element_type=jnp.float32)      # (N, N)
            s = s - jnp.max(s, axis=-1, keepdims=True)
            e = jnp.exp(s)
            p = e * pl.reciprocal(jnp.sum(e, axis=-1, keepdims=True),
                                  approx=True)
            o_h = jnp.dot(p.astype(jnp.bfloat16), vh,
                          preferred_element_type=jnp.float32)            # (N, D)
            attn_vmem[r0:r0 + N, c0:c0 + D] = o_h

    attn = jnp.dot(attn_vmem[...].astype(jnp.bfloat16), wp_ref[0],
                   preferred_element_type=jnp.float32) + bp_ref[0]
    x = x + attn

    # ---------- MLP branch: x + fc2(relu(fc1(LN2(x)))) ----------
    xn2 = _layernorm(x, ln2g_ref[0], ln2b_ref[0])
    h1 = jnp.dot(xn2.astype(jnp.bfloat16), w1_ref[0],
                 preferred_element_type=jnp.float32) + b1_ref[0]
    h1 = jnp.maximum(h1, 0.0)                           # nnf.relu
    mlp = jnp.dot(h1.astype(jnp.bfloat16), w2_ref[0],
                  preferred_element_type=jnp.float32) + b2_ref[0]
    x = x + mlp
    # dropout(p=0.0) is the identity.

    x_vmem[...] = x.reshape(Bt, N, C)

    # Last layer: emit this batch tile's final residual stream.
    @pl.when(layer == pl.num_programs(1) - 1)
    def _():
        o_ref[...] = x_vmem[...].astype(o_ref.dtype)


def transformer_forward(x, stacked, num_heads, block_b=None):
    """Runs the full layer stack in a single pallas_call.

    grid = (batch_tiles, num_layers):
      axis 0 ("parallel")  : independent batch tiles (megacore shardable)
      axis 1 ("arbitrary") : layers; residual stream stays resident in VMEM
    """
    B, N, C = x.shape
    L = stacked["wq"].shape[0]
    Hd = stacked["w1"].shape[2]

    if block_b is None:
        # Batch rows together for MXU occupancy, but keep >=2 batch tiles when
        # possible so both v7x TensorCores get work.
        block_b = max(1, min(max(B // 2, 1), pl.cdiv(256, N)))
        while B % block_b:
            block_b -= 1
    num_b_tiles = B // block_b

    def wspec(shape):
        return pl.BlockSpec((1,) + shape, lambda b, l: (l, 0, 0))

    in_specs = [
        pl.BlockSpec((block_b, N, C), lambda b, l: (b, 0, 0)),   # x
        wspec((1, C)), wspec((1, C)),                            # ln1 gamma/beta
        wspec((C, C)),                                           # Wq (pre-scaled, bf16)
        wspec((C, 2 * C)),                                       # Wkv (bf16)
        wspec((C, C)), wspec((1, C)),                            # Wproj (bf16), bproj
        wspec((1, C)), wspec((1, C)),                            # ln2 gamma/beta
        wspec((C, Hd)), wspec((1, Hd)),                          # fc1 W (bf16), b
        wspec((Hd, C)), wspec((1, C)),                           # fc2 W (bf16), b
    ]
    out_spec = pl.BlockSpec((block_b, N, C), lambda b, l: (b, 0, 0))

    scratch_shapes = [
        pltpu.VMEM((block_b, N, C), jnp.float32),   # resident residual stream
        pltpu.VMEM((block_b * N, C), jnp.float32),  # per-head attention staging
    ]

    # Rough VMEM budget: double-buffered inputs + output + scratch, clamped to
    # [32 MiB, 64 MiB] so it remains valid on v7x's 64 MiB VMEM.
    # TODO(synk): at realistic C/N, K-tile the weight matmuls (extra
    # "arbitrary" grid axis + f32 accumulator) instead of keeping every
    # per-layer weight fully resident.
    F32, BF16 = 4, 2
    weight_bytes = BF16 * (2 * C * C + C * 2 * C + C * Hd + Hd * C) \
        + F32 * (6 * C + Hd)
    act_bytes = F32 * block_b * N * C
    scratch_bytes = 2 * F32 * block_b * N * C
    est = 2 * (weight_bytes + 2 * act_bytes) + scratch_bytes + (1 << 20)
    vmem_limit = int(min(max(est, 32 << 20), 64 << 20))

    kernel = functools.partial(transformer_stack_kernel, num_heads=num_heads)
    return pl.pallas_call(
        kernel,
        out_shape=jax.ShapeDtypeStruct((B, N, C), x.dtype),
        grid_spec=pltpu.PrefetchScalarGridSpec(
            num_scalar_prefetch=0,
            grid=(num_b_tiles, L),
            in_specs=in_specs,
            out_specs=out_spec,
            scratch_shapes=scratch_shapes,
        ),
        compiler_params=pltpu.CompilerParams(
            dimension_semantics=("parallel", "arbitrary"),
            vmem_limit_bytes=vmem_limit,
        ),
    )(x, stacked["ln1_g"], stacked["ln1_b"], stacked["wq"], stacked["wkv"],
      stacked["wp"], stacked["bp"], stacked["ln2_g"], stacked["ln2_b"],
      stacked["w1"], stacked["b1"], stacked["w2"], stacked["b2"])


# ---------------- parameter construction ----------------
def init_layer_params(key, dim_self, mlp_ratio):
    C = dim_self
    Hd = int(dim_self * mlp_ratio)
    ks = jax.random.split(key, 8)
    s = 0.02
    return {
        "ln1_g": jnp.ones((1, C), jnp.float32),
        "ln1_b": jnp.zeros((1, C), jnp.float32),
        "wq":   s * jax.random.normal(ks[0], (C, C), jnp.float32),
        "wkv":  s * jax.random.normal(ks[1], (C, 2 * C), jnp.float32),
        "wp":   s * jax.random.normal(ks[2], (C, C), jnp.float32),
        "bp":   s * jax.random.normal(ks[3], (1, C), jnp.float32),
        "ln2_g": jnp.ones((1, C), jnp.float32),
        "ln2_b": jnp.zeros((1, C), jnp.float32),
        "w1":   s * jax.random.normal(ks[4], (C, Hd), jnp.float32),
        "b1":   s * jax.random.normal(ks[5], (1, Hd), jnp.float32),
        "w2":   s * jax.random.normal(ks[6], (Hd, C), jnp.float32),
        "b2":   s * jax.random.normal(ks[7], (1, C), jnp.float32),
    }


def stack_params(layer_params, num_heads):
    """Stack per-layer params along a leading L axis (one-time host prep),
    cast matmul weights to MXU-native bf16 and fold 1/sqrt(D) into Wq."""
    C = layer_params[0]["wq"].shape[0]
    D = C // num_heads
    scale = float(D) ** -0.5

    def stk(name):
        return jnp.stack([p[name] for p in layer_params], axis=0)

    return {
        "ln1_g": stk("ln1_g"), "ln1_b": stk("ln1_b"),
        "wq":    (stk("wq") * scale).astype(jnp.bfloat16),
        "wkv":   stk("wkv").astype(jnp.bfloat16),
        "wp":    stk("wp").astype(jnp.bfloat16),
        "bp":    stk("bp"),
        "ln2_g": stk("ln2_g"), "ln2_b": stk("ln2_b"),
        "w1":    stk("w1").astype(jnp.bfloat16),
        "b1":    stk("b1"),
        "w2":    stk("w2").astype(jnp.bfloat16),
        "b2":    stk("b2"),
    }


# ---------------- pure-JAX reference (mirrors the PyTorch forward) ----------------
def _ref_layer(x, p, num_heads):
    def ln(z, g, b):
        mu = z.mean(-1, keepdims=True)
        var = ((z - mu) ** 2).mean(-1, keepdims=True)
        return (z - mu) / jnp.sqrt(var + LN_EPS) * g + b

    B, N, C = x.shape
    D = C // num_heads
    xn = ln(x, p["ln1_g"][0], p["ln1_b"][0])
    q = (xn @ p["wq"]).reshape(B, N, num_heads, D)
    kv = (xn @ p["wkv"]).reshape(B, N, 2, num_heads, D)
    k, v = kv[:, :, 0], kv[:, :, 1]
    att = jnp.einsum('bnhd,bmhd->bnmh', q, k) * (D ** -0.5)
    att = jax.nn.softmax(att, axis=2)
    out = jnp.einsum('bnmh,bmhd->bnhd', att, v).reshape(B, N, C)
    x = x + (out @ p["wp"] + p["bp"][0])
    xn2 = ln(x, p["ln2_g"][0], p["ln2_b"][0])
    h1 = jax.nn.relu(xn2 @ p["w1"] + p["b1"][0])
    return x + (h1 @ p["w2"] + p["b2"][0])


def _ref_forward(x, layer_params, num_heads):
    for p in layer_params:
        x = _ref_layer(x, p, num_heads)
    return x


if __name__ == "__main__":
    # Transformer(dim_self=32, num_heads=4, num_layers=2, mlp_ratio=2.0, enc_dec=False)
    B, N, C = 2, 8, 32
    num_heads = 4
    num_layers = 2
    mlp_ratio = 2.0

    key = jax.random.PRNGKey(0)
    kx, *layer_keys = jax.random.split(key, num_layers + 1)
    x = jax.random.normal(kx, (B, N, C), jnp.float32)
    layer_params = [init_layer_params(k, C, mlp_ratio) for k in layer_keys]

    stacked = stack_params(layer_params, num_heads)
    out = transformer_forward(x, stacked, num_heads)
    out = jax.block_until_ready(out)

    ref = _ref_forward(x, layer_params, num_heads)
    assert out.shape == (B, N, C)
    err = float(jnp.max(jnp.abs(out - ref)))
    # bf16 matmuls + approx reciprocal -> slightly looser tolerance vs f32 ref.
    assert jnp.allclose(out, ref, rtol=2e-2, atol=2e-2), f"max abs diff = {err}"

    print("KERNEL_OK")
</pallas_src>

<mosaic_0001>
module attributes {stable_mosaic.version = 11 : i64} {
  func.func @transformer_stack_kernel(%arg0: i32, %arg1: i32, %arg2: memref<1x8x32xf32, #tpu.memory_space<vmem>>, %arg3: memref<1x1x32xf32, #tpu.memory_space<vmem>>, %arg4: memref<1x1x32xf32, #tpu.memory_space<vmem>>, %arg5: memref<1x32x32xbf16, #tpu.memory_space<vmem>>, %arg6: memref<1x32x64xbf16, #tpu.memory_space<vmem>>, %arg7: memref<1x32x32xbf16, #tpu.memory_space<vmem>>, %arg8: memref<1x1x32xf32, #tpu.memory_space<vmem>>, %arg9: memref<1x1x32xf32, #tpu.memory_space<vmem>>, %arg10: memref<1x1x32xf32, #tpu.memory_space<vmem>>, %arg11: memref<1x32x64xbf16, #tpu.memory_space<vmem>>, %arg12: memref<1x1x64xf32, #tpu.memory_space<vmem>>, %arg13: memref<1x64x32xbf16, #tpu.memory_space<vmem>>, %arg14: memref<1x1x32xf32, #tpu.memory_space<vmem>>, %arg15: memref<1x8x32xf32, #tpu.memory_space<vmem>>, %arg16: memref<1x8x32xf32, #tpu.memory_space<vmem>>, %arg17: memref<8x32xf32, #tpu.memory_space<vmem>>) attributes {dimension_semantics = [#tpu.dimension_semantics<parallel>, #tpu.dimension_semantics<arbitrary>], iteration_bounds = array<i64: 2, 2>, scalar_prefetch = 0 : i64, scratch_operands = 2 : i64, tpu.core_type = #tpu.core_type<tc>, window_params = [{transform_indices = @transform_0, window_bounds = array<i64: 1, 8, 32>}, {transform_indices = @transform_1, window_bounds = array<i64: 1, 1, 32>}, {transform_indices = @transform_2, window_bounds = array<i64: 1, 1, 32>}, {transform_indices = @transform_3, window_bounds = array<i64: 1, 32, 32>}, {transform_indices = @transform_4, window_bounds = array<i64: 1, 32, 64>}, {transform_indices = @transform_5, window_bounds = array<i64: 1, 32, 32>}, {transform_indices = @transform_6, window_bounds = array<i64: 1, 1, 32>}, {transform_indices = @transform_7, window_bounds = array<i64: 1, 1, 32>}, {transform_indices = @transform_8, window_bounds = array<i64: 1, 1, 32>}, {transform_indices = @transform_9, window_bounds = array<i64: 1, 32, 64>}, {transform_indices = @transform_10, window_bounds = array<i64: 1, 1, 64>}, {transform_indices = @transform_11, window_bounds = array<i64: 1, 64, 32>}, {transform_indices = @transform_12, window_bounds = array<i64: 1, 1, 32>}, {transform_indices = @transform_13, window_bounds = array<i64: 1, 8, 32>}]} {
    %c0_i32 = arith.constant 0 : i32
    %0 = arith.cmpi eq, %arg1, %c0_i32 : i32
    %1 = arith.extui %0 : i1 to i32
    %c0_i32_0 = arith.constant 0 : i32
    %2 = arith.cmpi ne, %1, %c0_i32_0 : i32
    scf.if %2 {
      %c0_81 = arith.constant 0 : index
      %c0_82 = arith.constant 0 : index
      %c0_83 = arith.constant 0 : index
      %178 = vector.load %arg2[%c0_81, %c0_82, %c0_83] : memref<1x8x32xf32, #tpu.memory_space<vmem>>, vector<1x8x32xf32>
      %c0_84 = arith.constant 0 : index
      %c0_85 = arith.constant 0 : index
      %c0_86 = arith.constant 0 : index
      %179 = vector.load %arg16[%c0_84, %c0_85, %c0_86] : memref<1x8x32xf32, #tpu.memory_space<vmem>>, vector<1x8x32xf32>
      tpu.vector_store %arg16[%c0_84, %c0_85, %c0_86], %178 {strides = array<i32>} : memref<1x8x32xf32, #tpu.memory_space<vmem>>, vector<1x8x32xf32>,
    } else {
    }
    %c0 = arith.constant 0 : index
    %c0_1 = arith.constant 0 : index
    %c0_2 = arith.constant 0 : index
    %3 = vector.load %arg16[%c0, %c0_1, %c0_2] : memref<1x8x32xf32, #tpu.memory_space<vmem>>, vector<1x8x32xf32>
    %4 = vector.shape_cast %3 : vector<1x8x32xf32> to vector<8x32xf32>
    %c0_3 = arith.constant 0 : index
    %c0_4 = arith.constant 0 : index
    %c0_5 = arith.constant 0 : index
    %5 = vector.load %arg3[%c0_3, %c0_4, %c0_5] : memref<1x1x32xf32, #tpu.memory_space<vmem>>, vector<1x1x32xf32>
    %6 = vector.shape_cast %5 : vector<1x1x32xf32> to vector<1x32xf32>
    %c0_6 = arith.constant 0 : index
    %c0_7 = arith.constant 0 : index
    %c0_8 = arith.constant 0 : index
    %7 = vector.load %arg4[%c0_6, %c0_7, %c0_8] : memref<1x1x32xf32, #tpu.memory_space<vmem>>, vector<1x1x32xf32>
    %8 = vector.shape_cast %7 : vector<1x1x32xf32> to vector<1x32xf32>
    %cst = arith.constant dense<0.000000e+00> : vector<8xf32>
    %9 = vector.multi_reduction <add>, %4, %cst [1] : vector<8x32xf32> to vector<8xf32>
    %10 = vector.shape_cast %9 : vector<8xf32> to vector<8x1xf32>
    %cst_9 = arith.constant 3.200000e+01 : f32
    %11 = vector.broadcast %cst_9 : f32 to vector<8x1xf32>
    %12 = arith.divf %10, %11 : vector<8x1xf32>
    %13 = vector.broadcast %12 : vector<8x1xf32> to vector<8x32xf32>
    %14 = arith.subf %4, %13 : vector<8x32xf32>
    %15 = arith.mulf %14, %14 : vector<8x32xf32>
    %cst_10 = arith.constant dense<0.000000e+00> : vector<8xf32>
    %16 = vector.multi_reduction <add>, %15, %cst_10 [1] : vector<8x32xf32> to vector<8xf32>
    %17 = vector.shape_cast %16 : vector<8xf32> to vector<8x1xf32>
    %cst_11 = arith.constant 3.200000e+01 : f32
    %18 = vector.broadcast %cst_11 : f32 to vector<8x1xf32>
    %19 = arith.divf %17, %18 : vector<8x1xf32>
    %20 = vector.broadcast %12 : vector<8x1xf32> to vector<8x32xf32>
    %21 = arith.subf %4, %20 : vector<8x32xf32>
    %cst_12 = arith.constant 9.99999974E-6 : f32
    %22 = vector.broadcast %cst_12 : f32 to vector<8x1xf32>
    %23 = arith.addf %19, %22 : vector<8x1xf32>
    %24 = math.rsqrt %23 : vector<8x1xf32>
    %25 = vector.broadcast %24 : vector<8x1xf32> to vector<8x32xf32>
    %26 = arith.mulf %21, %25 : vector<8x32xf32>
    %27 = vector.broadcast %6 : vector<1x32xf32> to vector<8x32xf32>
    %28 = arith.mulf %26, %27 : vector<8x32xf32>
    %29 = vector.broadcast %8 : vector<1x32xf32> to vector<8x32xf32>
    %30 = arith.addf %28, %29 : vector<8x32xf32>
    %31 = arith.truncf %30 : vector<8x32xf32> to vector<8x32xbf16>
    %c0_13 = arith.constant 0 : index
    %c0_14 = arith.constant 0 : index
    %c0_15 = arith.constant 0 : index
    %32 = vector.load %arg5[%c0_13, %c0_14, %c0_15] : memref<1x32x32xbf16, #tpu.memory_space<vmem>>, vector<1x32x32xbf16>
    %33 = vector.shape_cast %32 : vector<1x32x32xbf16> to vector<32x32xbf16>
    %cst_16 = arith.constant dense<0.000000e+00> : vector<8x32xf32>
    %34 = tpu.matmul %31, %33, %cst_16 {dimension_numbers = #tpu.dot_dimension_numbers<[1], [0], [0], [1], [0, 0, 1, 1], [], []>} : vector<8x32xbf16>, vector<32x32xbf16>, vector<8x32xf32> -> vector<8x32xf32>
    %c0_17 = arith.constant 0 : index
    %c0_18 = arith.constant 0 : index
    %c0_19 = arith.constant 0 : index
    %35 = vector.load %arg6[%c0_17, %c0_18, %c0_19] : memref<1x32x64xbf16, #tpu.memory_space<vmem>>, vector<1x32x64xbf16>
    %36 = vector.shape_cast %35 : vector<1x32x64xbf16> to vector<32x64xbf16>
    %cst_20 = arith.constant dense<0.000000e+00> : vector<8x64xf32>
    %37 = tpu.matmul %31, %36, %cst_20 {dimension_numbers = #tpu.dot_dimension_numbers<[1], [0], [0], [1], [0, 0, 1, 1], [], []>} : vector<8x32xbf16>, vector<32x64xbf16>, vector<8x64xf32> -> vector<8x64xf32>
    %38 = vector.extract_strided_slice %34 {offsets = [0, 0], sizes = [8, 8], strides = [1, 1]} : vector<8x32xf32> to vector<8x8xf32>
    %39 = arith.truncf %38 : vector<8x8xf32> to vector<8x8xbf16>
    %40 = vector.extract_strided_slice %37 {offsets = [0, 0], sizes = [8, 8], strides = [1, 1]} : vector<8x64xf32> to vector<8x8xf32>
    %41 = arith.truncf %40 : vector<8x8xf32> to vector<8x8xbf16>
    %42 = vector.extract_strided_slice %37 {offsets = [0, 32], sizes = [8, 8], strides = [1, 1]} : vector<8x64xf32> to vector<8x8xf32>
    %43 = arith.truncf %42 : vector<8x8xf32> to vector<8x8xbf16>
    %cst_21 = arith.constant dense<0.000000e+00> : vector<8x8xf32>
    %44 = tpu.matmul %39, %41, %cst_21 {dimension_numbers = #tpu.dot_dimension_numbers<[1], [1], [0], [0], [0, 0, 1, 0], [], []>} : vector<8x8xbf16>, vector<8x8xbf16>, vector<8x8xf32> -> vector<8x8xf32>
    %cst_22 = arith.constant dense<0xFF800000> : vector<8xf32>
    %45 = vector.multi_reduction <maximumf>, %44, %cst_22 [1] : vector<8x8xf32> to vector<8xf32>
    %46 = vector.shape_cast %45 : vector<8xf32> to vector<8x1xf32>
    %47 = vector.broadcast %46 : vector<8x1xf32> to vector<8x8xf32>
    %48 = arith.subf %44, %47 : vector<8x8xf32>
    %49 = math.exp %48 : vector<8x8xf32>
    %cst_23 = arith.constant dense<0.000000e+00> : vector<8xf32>
    %50 = vector.multi_reduction <add>, %49, %cst_23 [1] : vector<8x8xf32> to vector<8xf32>
    %51 = vector.shape_cast %50 : vector<8xf32> to vector<8x1xf32>
    %52 = tpu.reciprocal %51 {approx = true} : vector<8x1xf32> -> vector<8x1xf32>
    %53 = vector.broadcast %52 : vector<8x1xf32> to vector<8x8xf32>
    %54 = arith.mulf %49, %53 : vector<8x8xf32>
    %55 = arith.truncf %54 : vector<8x8xf32> to vector<8x8xbf16>
    %cst_24 = arith.constant dense<0.000000e+00> : vector<8x8xf32>
    %56 = tpu.matmul %55, %43, %cst_24 {dimension_numbers = #tpu.dot_dimension_numbers<[1], [0], [0], [1], [0, 0, 1, 1], [], []>} : vector<8x8xbf16>, vector<8x8xbf16>, vector<8x8xf32> -> vector<8x8xf32>
    %c0_25 = arith.constant 0 : index
    %c0_26 = arith.constant 0 : index
    %57 = vector.load %arg17[%c0_25, %c0_26] : memref<8x32xf32, #tpu.memory_space<vmem>>, vector<8x8xf32>
    tpu.vector_store %arg17[%c0_25, %c0_26], %56 {strides = array<i32>} : memref<8x32xf32, #tpu.memory_space<vmem>>, vector<8x8xf32>,
    %58 = vector.extract_strided_slice %34 {offsets = [0, 8], sizes = [8, 8], strides = [1, 1]} : vector<8x32xf32> to vector<8x8xf32>
    %59 = arith.truncf %58 : vector<8x8xf32> to vector<8x8xbf16>
    %60 = vector.extract_strided_slice %37 {offsets = [0, 8], sizes = [8, 8], strides = [1, 1]} : vector<8x64xf32> to vector<8x8xf32>
    %61 = arith.truncf %60 : vector<8x8xf32> to vector<8x8xbf16>
    %62 = vector.extract_strided_slice %37 {offsets = [0, 40], sizes = [8, 8], strides = [1, 1]} : vector<8x64xf32> to vector<8x8xf32>
    %63 = arith.truncf %62 : vector<8x8xf32> to vector<8x8xbf16>
    %cst_27 = arith.constant dense<0.000000e+00> : vector<8x8xf32>
    %64 = tpu.matmul %59, %61, %cst_27 {dimension_numbers = #tpu.dot_dimension_numbers<[1], [1], [0], [0], [0, 0, 1, 0], [], []>} : vector<8x8xbf16>, vector<8x8xbf16>, vector<8x8xf32> -> vector<8x8xf32>
    %cst_28 = arith.constant dense<0xFF800000> : vector<8xf32>
    %65 = vector.multi_reduction <maximumf>, %64, %cst_28 [1] : vector<8x8xf32> to vector<8xf32>
    %66 = vector.shape_cast %65 : vector<8xf32> to vector<8x1xf32>
    %67 = vector.broadcast %66 : vector<8x1xf32> to vector<8x8xf32>
    %68 = arith.subf %64, %67 : vector<8x8xf32>
    %69 = math.exp %68 : vector<8x8xf32>
    %cst_29 = arith.constant dense<0.000000e+00> : vector<8xf32>
    %70 = vector.multi_reduction <add>, %69, %cst_29 [1] : vector<8x8xf32> to vector<8xf32>
    %71 = vector.shape_cast %70 : vector<8xf32> to vector<8x1xf32>
    %72 = tpu.reciprocal %71 {approx = true} : vector<8x1xf32> -> vector<8x1xf32>
    %73 = vector.broadcast %72 : vector<8x1xf32> to vector<8x8xf32>
    %74 = arith.mulf %69, %73 : vector<8x8xf32>
    %75 = arith.truncf %74 : vector<8x8xf32> to vector<8x8xbf16>
    %cst_30 = arith.constant dense<0.000000e+00> : vector<8x8xf32>
    %76 = tpu.matmul %75, %63, %cst_30 {dimension_numbers = #tpu.dot_dimension_numbers<[1], [0], [0], [1], [0, 0, 1, 1], [], []>} : vector<8x8xbf16>, vector<8x8xbf16>, vector<8x8xf32> -> vector<8x8xf32>
    %c0_31 = arith.constant 0 : index
    %c8 = arith.constant 8 : index
    %77 = vector.load %arg17[%c0_31, %c8] : memref<8x32xf32, #tpu.memory_space<vmem>>, vector<8x8xf32>
    tpu.vector_store %arg17[%c0_31, %c8], %76 {strides = array<i32>} : memref<8x32xf32, #tpu.memory_space<vmem>>, vector<8x8xf32>,
    %78 = vector.extract_strided_slice %34 {offsets = [0, 16], sizes = [8, 8], strides = [1, 1]} : vector<8x32xf32> to vector<8x8xf32>
    %79 = arith.truncf %78 : vector<8x8xf32> to vector<8x8xbf16>
    %80 = vector.extract_strided_slice %37 {offsets = [0, 16], sizes = [8, 8], strides = [1, 1]} : vector<8x64xf32> to vector<8x8xf32>
    %81 = arith.truncf %80 : vector<8x8xf32> to vector<8x8xbf16>
    %82 = vector.extract_strided_slice %37 {offsets = [0, 48], sizes = [8, 8], strides = [1, 1]} : vector<8x64xf32> to vector<8x8xf32>
    %83 = arith.truncf %82 : vector<8x8xf32> to vector<8x8xbf16>
    %cst_32 = arith.constant dense<0.000000e+00> : vector<8x8xf32>
    %84 = tpu.matmul %79, %81, %cst_32 {dimension_numbers = #tpu.dot_dimension_numbers<[1], [1], [0], [0], [0, 0, 1, 0], [], []>} : vector<8x8xbf16>, vector<8x8xbf16>, vector<8x8xf32> -> vector<8x8xf32>
    %cst_33 = arith.constant dense<0xFF800000> : vector<8xf32>
    %85 = vector.multi_reduction <maximumf>, %84, %cst_33 [1] : vector<8x8xf32> to vector<8xf32>
    %86 = vector.shape_cast %85 : vector<8xf32> to vector<8x1xf32>
    %87 = vector.broadcast %86 : vector<8x1xf32> to vector<8x8xf32>
    %88 = arith.subf %84, %87 : vector<8x8xf32>
    %89 = math.exp %88 : vector<8x8xf32>
    %cst_34 = arith.constant dense<0.000000e+00> : vector<8xf32>
    %90 = vector.multi_reduction <add>, %89, %cst_34 [1] : vector<8x8xf32> to vector<8xf32>
    %91 = vector.shape_cast %90 : vector<8xf32> to vector<8x1xf32>
    %92 = tpu.reciprocal %91 {approx = true} : vector<8x1xf32> -> vector<8x1xf32>
    %93 = vector.broadcast %92 : vector<8x1xf32> to vector<8x8xf32>
    %94 = arith.mulf %89, %93 : vector<8x8xf32>
    %95 = arith.truncf %94 : vector<8x8xf32> to vector<8x8xbf16>
    %cst_35 = arith.constant dense<0.000000e+00> : vector<8x8xf32>
    %96 = tpu.matmul %95, %83, %cst_35 {dimension_numbers = #tpu.dot_dimension_numbers<[1], [0], [0], [1], [0, 0, 1, 1], [], []>} : vector<8x8xbf16>, vector<8x8xbf16>, vector<8x8xf32> -> vector<8x8xf32>
    %c0_36 = arith.constant 0 : index
    %c16 = arith.constant 16 : index
    %97 = vector.load %arg17[%c0_36, %c16] : memref<8x32xf32, #tpu.memory_space<vmem>>, vector<8x8xf32>
    tpu.vector_store %arg17[%c0_36, %c16], %96 {strides = array<i32>} : memref<8x32xf32, #tpu.memory_space<vmem>>, vector<8x8xf32>,
    %98 = vector.extract_strided_slice %34 {offsets = [0, 24], sizes = [8, 8], strides = [1, 1]} : vector<8x32xf32> to vector<8x8xf32>
    %99 = arith.truncf %98 : vector<8x8xf32> to vector<8x8xbf16>
    %100 = vector.extract_strided_slice %37 {offsets = [0, 24], sizes = [8, 8], strides = [1, 1]} : vector<8x64xf32> to vector<8x8xf32>
    %101 = arith.truncf %100 : vector<8x8xf32> to vector<8x8xbf16>
    %102 = vector.extract_strided_slice %37 {offsets = [0, 56], sizes = [8, 8], strides = [1, 1]} : vector<8x64xf32> to vector<8x8xf32>
    %103 = arith.truncf %102 : vector<8x8xf32> to vector<8x8xbf16>
    %cst_37 = arith.constant dense<0.000000e+00> : vector<8x8xf32>
    %104 = tpu.matmul %99, %101, %cst_37 {dimension_numbers = #tpu.dot_dimension_numbers<[1], [1], [0], [0], [0, 0, 1, 0], [], []>} : vector<8x8xbf16>, vector<8x8xbf16>, vector<8x8xf32> -> vector<8x8xf32>
    %cst_38 = arith.constant dense<0xFF800000> : vector<8xf32>
    %105 = vector.multi_reduction <maximumf>, %104, %cst_38 [1] : vector<8x8xf32> to vector<8xf32>
    %106 = vector.shape_cast %105 : vector<8xf32> to vector<8x1xf32>
    %107 = vector.broadcast %106 : vector<8x1xf32> to vector<8x8xf32>
    %108 = arith.subf %104, %107 : vector<8x8xf32>
    %109 = math.exp %108 : vector<8x8xf32>
    %cst_39 = arith.constant dense<0.000000e+00> : vector<8xf32>
    %110 = vector.multi_reduction <add>, %109, %cst_39 [1] : vector<8x8xf32> to vector<8xf32>
    %111 = vector.shape_cast %110 : vector<8xf32> to vector<8x1xf32>
    %112 = tpu.reciprocal %111 {approx = true} : vector<8x1xf32> -> vector<8x1xf32>
    %113 = vector.broadcast %112 : vector<8x1xf32> to vector<8x8xf32>
    %114 = arith.mulf %109, %113 : vector<8x8xf32>
    %115 = arith.truncf %114 : vector<8x8xf32> to vector<8x8xbf16>
    %cst_40 = arith.constant dense<0.000000e+00> : vector<8x8xf32>
    %116 = tpu.matmul %115, %103, %cst_40 {dimension_numbers = #tpu.dot_dimension_numbers<[1], [0], [0], [1], [0, 0, 1, 1], [], []>} : vector<8x8xbf16>, vector<8x8xbf16>, vector<8x8xf32> -> vector<8x8xf32>
    %c0_41 = arith.constant 0 : index
    %c24 = arith.constant 24 : index
    %117 = vector.load %arg17[%c0_41, %c24] : memref<8x32xf32, #tpu.memory_space<vmem>>, vector<8x8xf32>
    tpu.vector_store %arg17[%c0_41, %c24], %116 {strides = array<i32>} : memref<8x32xf32, #tpu.memory_space<vmem>>, vector<8x8xf32>,
    %c0_42 = arith.constant 0 : index
    %c0_43 = arith.constant 0 : index
    %118 = vector.load %arg17[%c0_42, %c0_43] : memref<8x32xf32, #tpu.memory_space<vmem>>, vector<8x32xf32>
    %119 = arith.truncf %118 : vector<8x32xf32> to vector<8x32xbf16>
    %c0_44 = arith.constant 0 : index
    %c0_45 = arith.constant 0 : index
    %c0_46 = arith.constant 0 : index
    %120 = vector.load %arg7[%c0_44, %c0_45, %c0_46] : memref<1x32x32xbf16, #tpu.memory_space<vmem>>, vector<1x32x32xbf16>
    %121 = vector.shape_cast %120 : vector<1x32x32xbf16> to vector<32x32xbf16>
    %cst_47 = arith.constant dense<0.000000e+00> : vector<8x32xf32>
    %122 = tpu.matmul %119, %121, %cst_47 {dimension_numbers = #tpu.dot_dimension_numbers<[1], [0], [0], [1], [0, 0, 1, 1], [], []>} : vector<8x32xbf16>, vector<32x32xbf16>, vector<8x32xf32> -> vector<8x32xf32>
    %c0_48 = arith.constant 0 : index
    %c0_49 = arith.constant 0 : index
    %c0_50 = arith.constant 0 : index
    %123 = vector.load %arg8[%c0_48, %c0_49, %c0_50] : memref<1x1x32xf32, #tpu.memory_space<vmem>>, vector<1x1x32xf32>
    %124 = vector.shape_cast %123 : vector<1x1x32xf32> to vector<1x32xf32>
    %125 = vector.broadcast %124 : vector<1x32xf32> to vector<8x32xf32>
    %126 = arith.addf %122, %125 : vector<8x32xf32>
    %127 = arith.addf %4, %126 : vector<8x32xf32>
    %c0_51 = arith.constant 0 : index
    %c0_52 = arith.constant 0 : index
    %c0_53 = arith.constant 0 : index
    %128 = vector.load %arg9[%c0_51, %c0_52, %c0_53] : memref<1x1x32xf32, #tpu.memory_space<vmem>>, vector<1x1x32xf32>
    %129 = vector.shape_cast %128 : vector<1x1x32xf32> to vector<1x32xf32>
    %c0_54 = arith.constant 0 : index
    %c0_55 = arith.constant 0 : index
    %c0_56 = arith.constant 0 : index
    %130 = vector.load %arg10[%c0_54, %c0_55, %c0_56] : memref<1x1x32xf32, #tpu.memory_space<vmem>>, vector<1x1x32xf32>
    %131 = vector.shape_cast %130 : vector<1x1x32xf32> to vector<1x32xf32>
    %cst_57 = arith.constant dense<0.000000e+00> : vector<8xf32>
    %132 = vector.multi_reduction <add>, %127, %cst_57 [1] : vector<8x32xf32> to vector<8xf32>
    %133 = vector.shape_cast %132 : vector<8xf32> to vector<8x1xf32>
    %cst_58 = arith.constant 3.200000e+01 : f32
    %134 = vector.broadcast %cst_58 : f32 to vector<8x1xf32>
    %135 = arith.divf %133, %134 : vector<8x1xf32>
    %136 = vector.broadcast %135 : vector<8x1xf32> to vector<8x32xf32>
    %137 = arith.subf %127, %136 : vector<8x32xf32>
    %138 = arith.mulf %137, %137 : vector<8x32xf32>
    %cst_59 = arith.constant dense<0.000000e+00> : vector<8xf32>
    %139 = vector.multi_reduction <add>, %138, %cst_59 [1] : vector<8x32xf32> to vector<8xf32>
    %140 = vector.shape_cast %139 : vector<8xf32> to vector<8x1xf32>
    %cst_60 = arith.constant 3.200000e+01 : f32
    %141 = vector.broadcast %cst_60 : f32 to vector<8x1xf32>
    %142 = arith.divf %140, %141 : vector<8x1xf32>
    %143 = vector.broadcast %135 : vector<8x1xf32> to vector<8x32xf32>
    %144 = arith.subf %127, %143 : vector<8x32xf32>
    %cst_61 = arith.constant 9.99999974E-6 : f32
    %145 = vector.broadcast %cst_61 : f32 to vector<8x1xf32>
    %146 = arith.addf %142, %145 : vector<8x1xf32>
    %147 = math.rsqrt %146 : vector<8x1xf32>
    %148 = vector.broadcast %147 : vector<8x1xf32> to vector<8x32xf32>
    %149 = arith.mulf %144, %148 : vector<8x32xf32>
    %150 = vector.broadcast %129 : vector<1x32xf32> to vector<8x32xf32>
    %151 = arith.mulf %149, %150 : vector<8x32xf32>
    %152 = vector.broadcast %131 : vector<1x32xf32> to vector<8x32xf32>
    %153 = arith.addf %151, %152 : vector<8x32xf32>
    %154 = arith.truncf %153 : vector<8x32xf32> to vector<8x32xbf16>
    %c0_62 = arith.constant 0 : index
    %c0_63 = arith.constant 0 : index
    %c0_64 = arith.constant 0 : index
    %155 = vector.load %arg11[%c0_62, %c0_63, %c0_64] : memref<1x32x64xbf16, #tpu.memory_space<vmem>>, vector<1x32x64xbf16>
    %156 = vector.shape_cast %155 : vector<1x32x64xbf16> to vector<32x64xbf16>
    %cst_65 = arith.constant dense<0.000000e+00> : vector<8x64xf32>
    %157 = tpu.matmul %154, %156, %cst_65 {dimension_numbers = #tpu.dot_dimension_numbers<[1], [0], [0], [1], [0, 0, 1, 1], [], []>} : vector<8x32xbf16>, vector<32x64xbf16>, vector<8x64xf32> -> vector<8x64xf32>
    %c0_66 = arith.constant 0 : index
    %c0_67 = arith.constant 0 : index
    %c0_68 = arith.constant 0 : index
    %158 = vector.load %arg12[%c0_66, %c0_67, %c0_68] : memref<1x1x64xf32, #tpu.memory_space<vmem>>, vector<1x1x64xf32>
    %159 = vector.shape_cast %158 : vector<1x1x64xf32> to vector<1x64xf32>
    %160 = vector.broadcast %159 : vector<1x64xf32> to vector<8x64xf32>
    %161 = arith.addf %157, %160 : vector<8x64xf32>
    %cst_69 = arith.constant 0.000000e+00 : f32
    %162 = vector.broadcast %cst_69 : f32 to vector<8x64xf32>
    %163 = arith.maximumf %161, %162 : vector<8x64xf32>
    %164 = arith.truncf %163 : vector<8x64xf32> to vector<8x64xbf16>
    %c0_70 = arith.constant 0 : index
    %c0_71 = arith.constant 0 : index
    %c0_72 = arith.constant 0 : index
    %165 = vector.load %arg13[%c0_70, %c0_71, %c0_72] : memref<1x64x32xbf16, #tpu.memory_space<vmem>>, vector<1x64x32xbf16>
    %166 = vector.shape_cast %165 : vector<1x64x32xbf16> to vector<64x32xbf16>
    %cst_73 = arith.constant dense<0.000000e+00> : vector<8x32xf32>
    %167 = tpu.matmul %164, %166, %cst_73 {dimension_numbers = #tpu.dot_dimension_numbers<[1], [0], [0], [1], [0, 0, 1, 1], [], []>} : vector<8x64xbf16>, vector<64x32xbf16>, vector<8x32xf32> -> vector<8x32xf32>
    %c0_74 = arith.constant 0 : index
    %c0_75 = arith.constant 0 : index
    %c0_76 = arith.constant 0 : index
    %168 = vector.load %arg14[%c0_74, %c0_75, %c0_76] : memref<1x1x32xf32, #tpu.memory_space<vmem>>, vector<1x1x32xf32>
    %169 = vector.shape_cast %168 : vector<1x1x32xf32> to vector<1x32xf32>
    %170 = vector.broadcast %169 : vector<1x32xf32> to vector<8x32xf32>
    %171 = arith.addf %167, %170 : vector<8x32xf32>
    %172 = arith.addf %127, %171 : vector<8x32xf32>
    %173 = vector.shape_cast %172 : vector<8x32xf32> to vector<1x8x32xf32>
    %c0_77 = arith.constant 0 : index
    %c0_78 = arith.constant 0 : index
    %c0_79 = arith.constant 0 : index
    %174 = vector.load %arg16[%c0_77, %c0_78, %c0_79] : memref<1x8x32xf32, #tpu.memory_space<vmem>>, vector<1x8x32xf32>
    tpu.vector_store %arg16[%c0_77, %c0_78, %c0_79], %173 {strides = array<i32>} : memref<1x8x32xf32, #tpu.memory_space<vmem>>, vector<1x8x32xf32>,
    %c1_i32 = arith.constant 1 : i32
    %175 = arith.cmpi eq, %arg1, %c1_i32 : i32
    %176 = arith.extui %175 : i1 to i32
    %c0_i32_80 = arith.constant 0 : i32
    %177 = arith.cmpi ne, %176, %c0_i32_80 : i32
    scf.if %177 {
      %c0_81 = arith.constant 0 : index
      %c0_82 = arith.constant 0 : index
      %c0_83 = arith.constant 0 : index
      %178 = vector.load %arg16[%c0_81, %c0_82, %c0_83] : memref<1x8x32xf32, #tpu.memory_space<vmem>>, vector<1x8x32xf32>
      %c0_84 = arith.constant 0 : index
      %c0_85 = arith.constant 0 : index
      %c0_86 = arith.constant 0 : index
      %179 = vector.load %arg15[%c0_84, %c0_85, %c0_86] : memref<1x8x32xf32, #tpu.memory_space<vmem>>, vector<1x8x32xf32>
      tpu.vector_store %arg15[%c0_84, %c0_85, %c0_86], %178 {strides = array<i32>} : memref<1x8x32xf32, #tpu.memory_space<vmem>>, vector<1x8x32xf32>,
    } else {
    }
    return
  }
  func.func @transform_0(%arg0: i32, %arg1: i32) -> (i32, i32, i32) {
    %c0_i32 = arith.constant 0 : i32
    %c0_i32_0 = arith.constant 0 : i32
    %c0_i32_1 = arith.constant 0 : i32
    return %arg0, %c0_i32, %c0_i32_0 : i32, i32, i32
  }
  func.func @transform_1(%arg0: i32, %arg1: i32) -> (i32, i32, i32) {
    %c0_i32 = arith.constant 0 : i32
    %c0_i32_0 = arith.constant 0 : i32
    %c0_i32_1 = arith.constant 0 : i32
    return %arg1, %c0_i32, %c0_i32_0 : i32, i32, i32
  }
  func.func @transform_2(%arg0: i32, %arg1: i32) -> (i32, i32, i32) {
    %c0_i32 = arith.constant 0 : i32
    %c0_i32_0 = arith.constant 0 : i32
    %c0_i32_1 = arith.constant 0 : i32
    return %arg1, %c0_i32, %c0_i32_0 : i32, i32, i32
  }
  func.func @transform_3(%arg0: i32, %arg1: i32) -> (i32, i32, i32) {
    %c0_i32 = arith.constant 0 : i32
    %c0_i32_0 = arith.constant 0 : i32
    %c0_i32_1 = arith.constant 0 : i32
    return %arg1, %c0_i32, %c0_i32_0 : i32, i32, i32
  }
  func.func @transform_4(%arg0: i32, %arg1: i32) -> (i32, i32, i32) {
    %c0_i32 = arith.constant 0 : i32
    %c0_i32_0 = arith.constant 0 : i32
    %c0_i32_1 = arith.constant 0 : i32
    return %arg1, %c0_i32, %c0_i32_0 : i32, i32, i32
  }
  func.func @transform_5(%arg0: i32, %arg1: i32) -> (i32, i32, i32) {
    %c0_i32 = arith.constant 0 : i32
    %c0_i32_0 = arith.constant 0 : i32
    %c0_i32_1 = arith.constant 0 : i32
    return %arg1, %c0_i32, %c0_i32_0 : i32, i32, i32
  }
  func.func @transform_6(%arg0: i32, %arg1: i32) -> (i32, i32, i32) {
    %c0_i32 = arith.constant 0 : i32
    %c0_i32_0 = arith.constant 0 : i32
    %c0_i32_1 = arith.constant 0 : i32
    return %arg1, %c0_i32, %c0_i32_0 : i32, i32, i32
  }
  func.func @transform_7(%arg0: i32, %arg1: i32) -> (i32, i32, i32) {
    %c0_i32 = arith.constant 0 : i32
    %c0_i32_0 = arith.constant 0 : i32
    %c0_i32_1 = arith.constant 0 : i32
    return %arg1, %c0_i32, %c0_i32_0 : i32, i32, i32
  }
  func.func @transform_8(%arg0: i32, %arg1: i32) -> (i32, i32, i32) {
    %c0_i32 = arith.constant 0 : i32
    %c0_i32_0 = arith.constant 0 : i32
    %c0_i32_1 = arith.constant 0 : i32
    return %arg1, %c0_i32, %c0_i32_0 : i32, i32, i32
  }
  func.func @transform_9(%arg0: i32, %arg1: i32) -> (i32, i32, i32) {
    %c0_i32 = arith.constant 0 : i32
    %c0_i32_0 = arith.constant 0 : i32
    %c0_i32_1 = arith.constant 0 : i32
    return %arg1, %c0_i32, %c0_i32_0 : i32, i32, i32
  }
  func.func @transform_10(%arg0: i32, %arg1: i32) -> (i32, i32, i32) {
    %c0_i32 = arith.constant 0 : i32
    %c0_i32_0 = arith.constant 0 : i32
    %c0_i32_1 = arith.constant 0 : i32
    return %arg1, %c0_i32, %c0_i32_0 : i32, i32, i32
  }
  func.func @transform_11(%arg0: i32, %arg1: i32) -> (i32, i32, i32) {
    %c0_i32 = arith.constant 0 : i32
    %c0_i32_0 = arith.constant 0 : i32
    %c0_i32_1 = arith.constant 0 : i32
    return %arg1, %c0_i32, %c0_i32_0 : i32, i32, i32
  }
  func.func @transform_12(%arg0: i32, %arg1: i32) -> (i32, i32, i32) {
    %c0_i32 = arith.constant 0 : i32
    %c0_i32_0 = arith.constant 0 : i32
    %c0_i32_1 = arith.constant 0 : i32
    return %arg1, %c0_i32, %c0_i32_0 : i32, i32, i32
  }
  func.func @transform_13(%arg0: i32, %arg1: i32) -> (i32, i32, i32) {
    %c0_i32 = arith.constant 0 : i32
    %c0_i32_0 = arith.constant 0 : i32
    %c0_i32_1 = arith.constant 0 : i32
    return %arg0, %c0_i32, %c0_i32_0 : i32, i32, i32
  }
}

</mosaic_0001>

<llo_original>
// kernel: tpu_custom_call.1
$region0: #{tpu_custom_call.1}
  #allocation0 [shape = 'u32[]', space=smem, size = 0x4, offset = 0x4, fixed_abs, tag = 'smem constant byte address 0x4 - core index']
  #allocation1 [shape = 'u32[144,128]{1,0:T(1,128)}', space=vmem, size = 0x12000, scoped, tag = 'internal scratch']
  #allocation2 [shape = 'f32[1,8,32]{2,1,0:T(8,128)}', space=vmem, size = 0x1000, scoped, tag = 'scratch operand']
  #allocation3 [shape = 'f32[8,32]{1,0:T(8,128)}', space=vmem, size = 0x1000, scoped, tag = 'scratch operand']
  %s0 = inlined_call_operand.hbm [shape: f32[2,8,32], index: 0, kind: input, shape index: {}]
  %s1 = inlined_call_operand.vmem [shape: f32[2,1,32], index: 1, kind: input, shape index: {}]
  %s2 = inlined_call_operand.vmem [shape: f32[2,1,32], index: 2, kind: input, shape index: {}]
  %s3 = inlined_call_operand.vmem [shape: bf16[2,32,32], index: 3, kind: input, shape index: {}]
  %s4 = inlined_call_operand.vmem [shape: bf16[2,32,64], index: 4, kind: input, shape index: {}]
  %s5 = inlined_call_operand.vmem [shape: bf16[2,32,32], index: 5, kind: input, shape index: {}]
  %s6 = inlined_call_operand.vmem [shape: f32[2,1,32], index: 6, kind: input, shape index: {}]
  %s7 = inlined_call_operand.vmem [shape: f32[2,1,32], index: 7, kind: input, shape index: {}]
  %s8 = inlined_call_operand.hbm [shape: f32[2,1,32], index: 8, kind: input, shape index: {}]
  %s9 = inlined_call_operand.hbm [shape: bf16[2,32,64], index: 9, kind: input, shape index: {}]
  %s10 = inlined_call_operand.hbm [shape: f32[2,1,64], index: 10, kind: input, shape index: {}]
  %s11 = inlined_call_operand.vmem [shape: bf16[2,64,32], index: 11, kind: input, shape index: {}]
  %s12 = inlined_call_operand.vmem [shape: f32[2,1,32], index: 12, kind: input, shape index: {}]
  %s13 = inlined_call_operand.hbm [shape: f32[2,8,32], index: 13, kind: output, shape index: {}]
  %s14 = sld [smem:[#allocation0]]
  $region109: #{tpu_custom_call.1} parent=0
    _
  %s16 = ssub.s32 1, %s14
  %s17 = scalar_select 0, %s16, %s14
  $region1: #{tpu_custom_call.1} parent=0
    #allocation4 [shape = 'u8[8192]{0}', space=vmem, size = 0x2000, scoped, tag = 'input window, operand 0']
    #allocation5 [shape = 's32[2]{0}', space=sflag, size = 0x8, scoped, tag = 'scoped memory for tpu_custom_call.1']
    #allocation6 [shape = 's32[2]{0}', space=sflag, size = 0x8, scoped, tag = 'scoped memory for tpu_custom_call.1']
    #allocation7 [shape = 'u8[1024]{0}', space=vmem, size = 0x400, scoped, tag = 'input window, operand 8']
    #allocation8 [shape = 's32[2]{0}', space=sflag, size = 0x8, scoped, tag = 'scoped memory for tpu_custom_call.1']
    #allocation9 [shape = 'u8[16384]{0}', space=vmem, size = 0x4000, scoped, tag = 'input window, operand 9']
    #allocation10 [shape = 'u8[1024]{0}', space=vmem, size = 0x400, scoped, tag = 'input window, operand 10']
    #allocation11 [shape = 's32[2]{0}', space=sflag, size = 0x8, scoped, tag = 'scoped memory for tpu_custom_call.1']
    #allocation12 [shape = 'u8[8192]{0}', space=vmem, size = 0x2000, scoped, tag = 'output window, operand 0']
    %18 = vsyncpa [#allocation5], 0
    %s19 = scalar_lea.sflag [#allocation5], 1
    %20 = vsyncpa %s19, 0
    %21 = vsyncpa [#allocation8], 0
    %s22 = scalar_lea.sflag [#allocation8], 1
    %23 = vsyncpa %s22, 0
    %24 = vsyncpa [#allocation11], 0
    %s25 = scalar_lea.sflag [#allocation11], 1
    %26 = vsyncpa %s25, 0
    %27 = vsyncpa [#allocation6], 0
    %s28 = scalar_lea.sflag [#allocation6], 1
    %29 = vsyncpa %s28, 0
    loop: start=0, step=1, limit=6
    $region2: #{tpu_custom_call.1} parent=1 // loop_pre_header
      _
    $region3: #{tpu_custom_call.1} parent=1 // loop_header
      %s31 = sphi 0, %s35
      %p32 = scmp.ge.s32.totalorder %s31, 6
      %s38 = sphi 0, %s50
      %s39 = sphi 0, %s46
      %s40 = sphi 0, %s38
      %s41 = sphi 0, %s39
      %s42 = sphi 0, %s40
      %s43 = sphi 0, %s41
      %s53 = sphi 0, %s55
      %s56 = sphi 0, %s53
      %s57 = sphi 0, %s56
      %s73 = sphi 0, %s57
      %s79 = sphi 0, %s81
      %s82 = sphi 0, %s79
      %s83 = sphi 0, %s82
      %s99 = sphi 0, %s83
      %s105 = sphi 0, %s107
      %s108 = sphi 0, %s105
      %s109 = sphi 0, %s108
      %s125 = sphi 0, %s109
      %s131 = sphi 0, %s133
      %s134 = sphi 0, %s131
      %s135 = sphi 0, %s134
      %s151 = sphi 0, %s135
      %s157 = sphi 0, %s159
      %s160 = sphi 0, %s157
      %s161 = sphi 0, %s160
      %s177 = sphi 0, %s161
      %s183 = sphi 0, %s185
      %s186 = sphi 0, %s183
      %s187 = sphi 0, %s186
      %s203 = sphi 0, %s187
      %s209 = sphi 0, %s211
      %s212 = sphi 0, %s209
      %s213 = sphi 0, %s212
      %s229 = sphi 0, %s213
      %s235 = sphi 0, %s237
      %s238 = sphi 0, %s235
      %s239 = sphi 0, %s238
      %s255 = sphi 0, %s239
      %s261 = sphi 0, %s263
      %s264 = sphi 0, %s261
      %s265 = sphi 0, %s264
      %s281 = sphi 0, %s265
      %s287 = sphi 0, %s289
      %s290 = sphi 0, %s287
      %s291 = sphi 0, %s290
      %s307 = sphi 0, %s291
      %s313 = sphi 0, %s315
      %s316 = sphi 0, %s313
      %s317 = sphi 0, %s316
      %s333 = sphi 0, %s317
      %s339 = sphi 0, %s341
      %s342 = sphi 0, %s339
      %s343 = sphi 0, %s342
      %s359 = sphi 0, %s343
      %s365 = sphi 0, %s367
      %s368 = sphi 0, %s365
      %s369 = sphi 0, %s368
      %s385 = sphi 0, %s369
      %s391 = sphi 0, %s393
      %s394 = sphi 0, %s391
      %s395 = sphi 0, %s394
      %s411 = sphi 0, %s395
    $region4: #{tpu_custom_call.1} parent=1 // loop_header_branch
      %34 = sbr.rel (%p32) target = $region8
    $region5: #{tpu_custom_call.1} parent=1 // loop_body
      %s36 = ssub.s32 %s31, 1
      %s37 = ssub.s32 %s31, 2
      %s44 = sadd.s32 1, %s39
      %p45 = scmp.ge.s32.totalorder %s44, 2
      %s46 = scalar_select %p45, 0, %s44
      %s47 = sadd.s32 1, %s38
      %s48 = scalar_select %p45, %s47, %s38
      %p49 = scmp.ge.s32.totalorder %s48, 2
      %s50 = scalar_select %p49, 0, %s48
      %s51 = ssub.s32 %s38, %s50
      %p52 = scmp.eq.s32.totalorder %s51, 0
      %s54 = sadd.s32 %s53, 1
      %s55 = scalar_select %p52, %s53, %s54
      %p58 = pneg %p52
      %p59 = scmp.eq.s32.totalorder %s31, 3
      %p60 = por %p58, %p59
      %p61 = scmp.ne.s32.totalorder %s53, %s56
      %p62 = scmp.eq.s32.totalorder %s31, 0
      %p63 = por %p61, %p62
      %p64 = scmp.ne.s32.totalorder %s53, %s56
      %p65 = scmp.eq.s32.totalorder %s36, 3
      %p66 = por %p64, %p65
      %p67 = scmp.ne.s32.totalorder %s56, %s57
      %p68 = scmp.eq.s32.totalorder %s36, 0
      %p69 = por %p67, %p68
      %p70 = scmp.ne.s32.totalorder %s56, %s57
      %p71 = scmp.eq.s32.totalorder %s37, 3
      %p72 = por %p70, %p71
      %p74 = scmp.ne.s32.totalorder %s57, %s73
      %p75 = scmp.eq.s32.totalorder %s37, 0
      %p76 = por %p74, %p75
      %s77 = ssub.s32 %s39, %s46
      %p78 = scmp.eq.s32.totalorder %s77, 0
      %s80 = sadd.s32 %s79, 1
      %s81 = scalar_select %p78, %s79, %s80
      %p84 = pneg %p78
      %p85 = scmp.eq.s32.totalorder %s31, 3
      %p86 = por %p84, %p85
      %p87 = scmp.ne.s32.totalorder %s79, %s82
      %p88 = scmp.eq.s32.totalorder %s31, 0
      %p89 = por %p87, %p88
      %p90 = scmp.ne.s32.totalorder %s79, %s82
      %p91 = scmp.eq.s32.totalorder %s36, 3
      %p92 = por %p90, %p91
      %p93 = scmp.ne.s32.totalorder %s82, %s83
      %p94 = scmp.eq.s32.totalorder %s36, 0
      %p95 = por %p93, %p94
      %p96 = scmp.ne.s32.totalorder %s82, %s83
      %p97 = scmp.eq.s32.totalorder %s37, 3
      %p98 = por %p96, %p97
      %p100 = scmp.ne.s32.totalorder %s83, %s99
      %p101 = scmp.eq.s32.totalorder %s37, 0
      %p102 = por %p100, %p101
      %s103 = ssub.s32 %s39, %s46
      %p104 = scmp.eq.s32.totalorder %s103, 0
      %s106 = sadd.s32 %s105, 1
      %s107 = scalar_select %p104, %s105, %s106
      %p110 = pneg %p104
      %p111 = scmp.eq.s32.totalorder %s31, 3
      %p112 = por %p110, %p111
      %p113 = scmp.ne.s32.totalorder %s105, %s108
      %p114 = scmp.eq.s32.totalorder %s31, 0
      %p115 = por %p113, %p114
      %p116 = scmp.ne.s32.totalorder %s105, %s108
      %p117 = scmp.eq.s32.totalorder %s36, 3
      %p118 = por %p116, %p117
      %p119 = scmp.ne.s32.totalorder %s108, %s109
      %p120 = scmp.eq.s32.totalorder %s36, 0
      %p121 = por %p119, %p120
      %p122 = scmp.ne.s32.totalorder %s108, %s109
      %p123 = scmp.eq.s32.totalorder %s37, 3
      %p124 = por %p122, %p123
      %p126 = scmp.ne.s32.totalorder %s109, %s125
      %p127 = scmp.eq.s32.totalorder %s37, 0
      %p128 = por %p126, %p127
      %s129 = ssub.s32 %s39, %s46
      %p130 = scmp.eq.s32.totalorder %s129, 0
      %s132 = sadd.s32 %s131, 1
      %s133 = scalar_select %p130, %s131, %s132
      %p136 = pneg %p130
      %p137 = scmp.eq.s32.totalorder %s31, 3
      %p138 = por %p136, %p137
      %p139 = scmp.ne.s32.totalorder %s131, %s134
      %p140 = scmp.eq.s32.totalorder %s31, 0
      %p141 = por %p139, %p140
      %p142 = scmp.ne.s32.totalorder %s131, %s134
      %p143 = scmp.eq.s32.totalorder %s36, 3
      %p144 = por %p142, %p143
      %p145 = scmp.ne.s32.totalorder %s134, %s135
      %p146 = scmp.eq.s32.totalorder %s36, 0
      %p147 = por %p145, %p146
      %p148 = scmp.ne.s32.totalorder %s134, %s135
      %p149 = scmp.eq.s32.totalorder %s37, 3
      %p150 = por %p148, %p149
      %p152 = scmp.ne.s32.totalorder %s135, %s151
      %p153 = scmp.eq.s32.totalorder %s37, 0
      %p154 = por %p152, %p153
      %s155 = ssub.s32 %s39, %s46
      %p156 = scmp.eq.s32.totalorder %s155, 0
      %s158 = sadd.s32 %s157, 1
      %s159 = scalar_select %p156, %s157, %s158
      %p162 = pneg %p156
      %p163 = scmp.eq.s32.totalorder %s31, 3
      %p164 = por %p162, %p163
      %p165 = scmp.ne.s32.totalorder %s157, %s160
      %p166 = scmp.eq.s32.totalorder %s31, 0
      %p167 = por %p165, %p166
      %p168 = scmp.ne.s32.totalorder %s157, %s160
      %p169 = scmp.eq.s32.totalorder %s36, 3
      %p170 = por %p168, %p169
      %p171 = scmp.ne.s32.totalorder %s160, %s161
      %p172 = scmp.eq.s32.totalorder %s36, 0
      %p173 = por %p171, %p172
      %p174 = scmp.ne.s32.totalorder %s160, %s161
      %p175 = scmp.eq.s32.totalorder %s37, 3
      %p176 = por %p174, %p175
      %p178 = scmp.ne.s32.totalorder %s161, %s177
      %p179 = scmp.eq.s32.totalorder %s37, 0
      %p180 = por %p178, %p179
      %s181 = ssub.s32 %s39, %s46
      %p182 = scmp.eq.s32.totalorder %s181, 0
      %s184 = sadd.s32 %s183, 1
      %s185 = scalar_select %p182, %s183, %s184
      %p188 = pneg %p182
      %p189 = scmp.eq.s32.totalorder %s31, 3
      %p190 = por %p188, %p189
      %p191 = scmp.ne.s32.totalorder %s183, %s186
      %p192 = scmp.eq.s32.totalorder %s31, 0
      %p193 = por %p191, %p192
      %p194 = scmp.ne.s32.totalorder %s183, %s186
      %p195 = scmp.eq.s32.totalorder %s36, 3
      %p196 = por %p194, %p195
      %p197 = scmp.ne.s32.totalorder %s186, %s187
      %p198 = scmp.eq.s32.totalorder %s36, 0
      %p199 = por %p197, %p198
      %p200 = scmp.ne.s32.totalorder %s186, %s187
      %p201 = scmp.eq.s32.totalorder %s37, 3
      %p202 = por %p200, %p201
      %p204 = scmp.ne.s32.totalorder %s187, %s203
      %p205 = scmp.eq.s32.totalorder %s37, 0
      %p206 = por %p204, %p205
      %s207 = ssub.s32 %s39, %s46
      %p208 = scmp.eq.s32.totalorder %s207, 0
      %s210 = sadd.s32 %s209, 1
      %s211 = scalar_select %p208, %s209, %s210
      %p214 = pneg %p208
      %p215 = scmp.eq.s32.totalorder %s31, 3
      %p216 = por %p214, %p215
      %p217 = scmp.ne.s32.totalorder %s209, %s212
      %p218 = scmp.eq.s32.totalorder %s31, 0
      %p219 = por %p217, %p218
      %p220 = scmp.ne.s32.totalorder %s209, %s212
      %p221 = scmp.eq.s32.totalorder %s36, 3
      %p222 = por %p220, %p221
      %p223 = scmp.ne.s32.totalorder %s212, %s213
      %p224 = scmp.eq.s32.totalorder %s36, 0
      %p225 = por %p223, %p224
      %p226 = scmp.ne.s32.totalorder %s212, %s213
      %p227 = scmp.eq.s32.totalorder %s37, 3
      %p228 = por %p226, %p227
      %p230 = scmp.ne.s32.totalorder %s213, %s229
      %p231 = scmp.eq.s32.totalorder %s37, 0
      %p232 = por %p230, %p231
      %s233 = ssub.s32 %s39, %s46
      %p234 = scmp.eq.s32.totalorder %s233, 0
      %s236 = sadd.s32 %s235, 1
      %s237 = scalar_select %p234, %s235, %s236
      %p240 = pneg %p234
      %p241 = scmp.eq.s32.totalorder %s31, 3
      %p242 = por %p240, %p241
      %p243 = scmp.ne.s32.totalorder %s235, %s238
      %p244 = scmp.eq.s32.totalorder %s31, 0
      %p245 = por %p243, %p244
      %p246 = scmp.ne.s32.totalorder %s235, %s238
      %p247 = scmp.eq.s32.totalorder %s36, 3
      %p248 = por %p246, %p247
      %p249 = scmp.ne.s32.totalorder %s238, %s239
      %p250 = scmp.eq.s32.totalorder %s36, 0
      %p251 = por %p249, %p250
      %p252 = scmp.ne.s32.totalorder %s238, %s239
      %p253 = scmp.eq.s32.totalorder %s37, 3
      %p254 = por %p252, %p253
      %p256 = scmp.ne.s32.totalorder %s239, %s255
      %p257 = scmp.eq.s32.totalorder %s37, 0
      %p258 = por %p256, %p257
      %s259 = ssub.s32 %s39, %s46
      %p260 = scmp.eq.s32.totalorder %s259, 0
      %s262 = sadd.s32 %s261, 1
      %s263 = scalar_select %p260, %s261, %s262
      %p266 = pneg %p260
      %p267 = scmp.eq.s32.totalorder %s31, 3
      %p268 = por %p266, %p267
      %p269 = scmp.ne.s32.totalorder %s261, %s264
      %p270 = scmp.eq.s32.totalorder %s31, 0
      %p271 = por %p269, %p270
      %p272 = scmp.ne.s32.totalorder %s261, %s264
      %p273 = scmp.eq.s32.totalorder %s36, 3
      %p274 = por %p272, %p273
      %p275 = scmp.ne.s32.totalorder %s264, %s265
      %p276 = scmp.eq.s32.totalorder %s36, 0
      %p277 = por %p275, %p276
      %p278 = scmp.ne.s32.totalorder %s264, %s265
      %p279 = scmp.eq.s32.totalorder %s37, 3
      %p280 = por %p278, %p279
      %p282 = scmp.ne.s32.totalorder %s265, %s281
      %p283 = scmp.eq.s32.totalorder %s37, 0
      %p284 = por %p282, %p283
      %s285 = ssub.s32 %s39, %s46
      %p286 = scmp.eq.s32.totalorder %s285, 0
      %s288 = sadd.s32 %s287, 1
      %s289 = scalar_select %p286, %s287, %s288
      %p292 = pneg %p286
      %p293 = scmp.eq.s32.totalorder %s31, 3
      %p294 = por %p292, %p293
      %p295 = scmp.ne.s32.totalorder %s287, %s290
      %p296 = scmp.eq.s32.totalorder %s31, 0
      %p297 = por %p295, %p296
      %p298 = scmp.ne.s32.totalorder %s287, %s290
      %p299 = scmp.eq.s32.totalorder %s36, 3
      %p300 = por %p298, %p299
      %p301 = scmp.ne.s32.totalorder %s290, %s291
      %p302 = scmp.eq.s32.totalorder %s36, 0
      %p303 = por %p301, %p302
      %p304 = scmp.ne.s32.totalorder %s290, %s291
      %p305 = scmp.eq.s32.totalorder %s37, 3
      %p306 = por %p304, %p305
      %p308 = scmp.ne.s32.totalorder %s291, %s307
      %p309 = scmp.eq.s32.totalorder %s37, 0
      %p310 = por %p308, %p309
      %s311 = ssub.s32 %s39, %s46
      %p312 = scmp.eq.s32.totalorder %s311, 0
      %s314 = sadd.s32 %s313, 1
      %s315 = scalar_select %p312, %s313, %s314
      %p318 = pneg %p312
      %p319 = scmp.eq.s32.totalorder %s31, 3
      %p320 = por %p318, %p319
      %p321 = scmp.ne.s32.totalorder %s313, %s316
      %p322 = scmp.eq.s32.totalorder %s31, 0
      %p323 = por %p321, %p322
      %p324 = scmp.ne.s32.totalorder %s313, %s316
      %p325 = scmp.eq.s32.totalorder %s36, 3
      %p326 = por %p324, %p325
      %p327 = scmp.ne.s32.totalorder %s316, %s317
      %p328 = scmp.eq.s32.totalorder %s36, 0
      %p329 = por %p327, %p328
      %p330 = scmp.ne.s32.totalorder %s316, %s317
      %p331 = scmp.eq.s32.totalorder %s37, 3
      %p332 = por %p330, %p331
      %p334 = scmp.ne.s32.totalorder %s317, %s333
      %p335 = scmp.eq.s32.totalorder %s37, 0
      %p336 = por %p334, %p335
      %s337 = ssub.s32 %s39, %s46
      %p338 = scmp.eq.s32.totalorder %s337, 0
      %s340 = sadd.s32 %s339, 1
      %s341 = scalar_select %p338, %s339, %s340
      %p344 = pneg %p338
      %p345 = scmp.eq.s32.totalorder %s31, 3
      %p346 = por %p344, %p345
      %p347 = scmp.ne.s32.totalorder %s339, %s342
      %p348 = scmp.eq.s32.totalorder %s31, 0
      %p349 = por %p347, %p348
      %p350 = scmp.ne.s32.totalorder %s339, %s342
      %p351 = scmp.eq.s32.totalorder %s36, 3
      %p352 = por %p350, %p351
      %p353 = scmp.ne.s32.totalorder %s342, %s343
      %p354 = scmp.eq.s32.totalorder %s36, 0
      %p355 = por %p353, %p354
      %p356 = scmp.ne.s32.totalorder %s342, %s343
      %p357 = scmp.eq.s32.totalorder %s37, 3
      %p358 = por %p356, %p357
      %p360 = scmp.ne.s32.totalorder %s343, %s359
      %p361 = scmp.eq.s32.totalorder %s37, 0
      %p362 = por %p360, %p361
      %s363 = ssub.s32 %s39, %s46
      %p364 = scmp.eq.s32.totalorder %s363, 0
      %s366 = sadd.s32 %s365, 1
      %s367 = scalar_select %p364, %s365, %s366
      %p370 = pneg %p364
      %p371 = scmp.eq.s32.totalorder %s31, 3
      %p372 = por %p370, %p371
      %p373 = scmp.ne.s32.totalorder %s365, %s368
      %p374 = scmp.eq.s32.totalorder %s31, 0
      %p375 = por %p373, %p374
      %p376 = scmp.ne.s32.totalorder %s365, %s368
      %p377 = scmp.eq.s32.totalorder %s36, 3
      %p378 = por %p376, %p377
      %p379 = scmp.ne.s32.totalorder %s368, %s369
      %p380 = scmp.eq.s32.totalorder %s36, 0
      %p381 = por %p379, %p380
      %p382 = scmp.ne.s32.totalorder %s368, %s369
      %p383 = scmp.eq.s32.totalorder %s37, 3
      %p384 = por %p382, %p383
      %p386 = scmp.ne.s32.totalorder %s369, %s385
      %p387 = scmp.eq.s32.totalorder %s37, 0
      %p388 = por %p386, %p387
      %s389 = ssub.s32 %s38, %s50
      %p390 = scmp.eq.s32.totalorder %s389, 0
      %s392 = sadd.s32 %s391, 1
      %s393 = scalar_select %p390, %s391, %s392
      %p396 = pneg %p390
      %p397 = scmp.eq.s32.totalorder %s31, 3
      %p398 = por %p396, %p397
      %p399 = scmp.ne.s32.totalorder %s391, %s394
      %p400 = scmp.eq.s32.totalorder %s31, 0
      %p401 = por %p399, %p400
      %p402 = scmp.ne.s32.totalorder %s391, %s394
      %p403 = scmp.eq.s32.totalorder %s36, 3
      %p404 = por %p402, %p403
      %p405 = scmp.ne.s32.totalorder %s394, %s395
      %p406 = scmp.eq.s32.totalorder %s36, 0
      %p407 = por %p405, %p406
      %p408 = scmp.ne.s32.totalorder %s394, %s395
      %p409 = scmp.eq.s32.totalorder %s37, 3
      %p410 = por %p408, %p409
      %p412 = scmp.ne.s32.totalorder %s395, %s411
      %p413 = scmp.eq.s32.totalorder %s37, 0
      %p414 = por %p412, %p413
      %p415 = scmp.le.s32.totalorder 1, %s31
      %p416 = scmp.lt.s32.totalorder %s31, 5
      %p417 = pnand %p415, %p416
      %p418 = pneg %p417
      // Predicated region
      $region9: #{tpu_custom_call.1} parent=5 // pred_check
        _
      $region10: #{tpu_custom_call.1} parent=5 // pred_check_branch
        %420 = sbr.rel (%p417) target = $region12
      $region11: #{tpu_custom_call.1} parent=5 // pred_region
        %s421 = ssub.s32 %s31, 1
      $region12: #{tpu_custom_call.1} parent=5 // pred_fallthru
        _
      %p422 = scmp.lt.s32.totalorder %s31, 4
      // Predicated region
      $region13: #{tpu_custom_call.1} parent=5 // pred_check
        %p423 = pneg %p422
      $region14: #{tpu_custom_call.1} parent=5 // pred_check_branch
        %425 = sbr.rel (%p423) target = $region16
      $region15: #{tpu_custom_call.1} parent=5 // pred_region
        // Predicated region
        $region17: #{tpu_custom_call.1} parent=15 // pred_check
          %p426 = pneg %p63
        $region18: #{tpu_custom_call.1} parent=15 // pred_check_branch
          %428 = sbr.rel (%p426) target = $region20
        $region19: #{tpu_custom_call.1} parent=15 // pred_region
          %s429 = sand.u32 %s53, 1
          %s430 = scalar_lea.sflag [#allocation5], %s429
          %s431 = sand.u32 %s53, 1
          %s432 = smul.addr %s431, 8
          %s433 = scalar_lea.vmem [#allocation4], %s432
          %s435 = ssub.s32 128, 128
          %436 = vsyncadd %s430, %s435
          %s437 = smul.addr %s38, 128
          %s438 = scalar_lea.hbm %s0, %s437
          %s440 = sshll.u32 %s433, 4
          %s441 = int_to_ptr.vmem [resolvable:$true] %s440
          %443 = dma.hbm_to_vmem [thread:$0]  %s438, 128, %s441, %s430
        $region20: #{tpu_custom_call.1} parent=15 // pred_fallthru
          _
        // Predicated region
        $region21: #{tpu_custom_call.1} parent=15 // pred_check
          %p444 = pneg %p89
        $region22: #{tpu_custom_call.1} parent=15 // pred_check_branch
          %446 = sbr.rel (%p444) target = $region24
        $region23: #{tpu_custom_call.1} parent=15 // pred_region
          %p447 = scmp.lt.s32.totalorder %s39, 1
          %s448 = scalar_select %p447, %s39, 1
          %s449 = scalar_lea.vmem %s1, %s448
        $region24: #{tpu_custom_call.1} parent=15 // pred_fallthru
          _
        // Predicated region
        $region25: #{tpu_custom_call.1} parent=15 // pred_check
          %p450 = pneg %p115
        $region26: #{tpu_custom_call.1} parent=15 // pred_check_branch
          %452 = sbr.rel (%p450) target = $region28
        $region27: #{tpu_custom_call.1} parent=15 // pred_region
          %p453 = scmp.lt.s32.totalorder %s39, 1
          %s454 = scalar_select %p453, %s39, 1
          %s455 = scalar_lea.vmem %s2, %s454
        $region28: #{tpu_custom_call.1} parent=15 // pred_fallthru
          _
        // Predicated region
        $region29: #{tpu_custom_call.1} parent=15 // pred_check
          %p456 = pneg %p141
        $region30: #{tpu_custom_call.1} parent=15 // pred_check_branch
          %458 = sbr.rel (%p456) target = $region32
        $region31: #{tpu_custom_call.1} parent=15 // pred_region
          %p459 = scmp.lt.s32.totalorder %s39, 1
          %s460 = scalar_select %p459, %s39, 1
          %s461 = smul.addr %s460, 4
          %s462 = smul.addr %s461, 4
          %s463 = scalar_lea.vmem %s3, %s462
        $region32: #{tpu_custom_call.1} parent=15 // pred_fallthru
          _
        // Predicated region
        $region33: #{tpu_custom_call.1} parent=15 // pred_check
          %p464 = pneg %p167
        $region34: #{tpu_custom_call.1} parent=15 // pred_check_branch
          %466 = sbr.rel (%p464) target = $region36
        $region35: #{tpu_custom_call.1} parent=15 // pred_region
          %p467 = scmp.lt.s32.totalorder %s39, 1
          %s468 = scalar_select %p467, %s39, 1
          %s469 = smul.addr %s468, 4
          %s470 = smul.addr %s469, 4
          %s471 = scalar_lea.vmem %s4, %s470
        $region36: #{tpu_custom_call.1} parent=15 // pred_fallthru
          _
        // Predicated region
        $region37: #{tpu_custom_call.1} parent=15 // pred_check
          %p472 = pneg %p193
        $region38: #{tpu_custom_call.1} parent=15 // pred_check_branch
          %474 = sbr.rel (%p472) target = $region40
        $region39: #{tpu_custom_call.1} parent=15 // pred_region
          %p475 = scmp.lt.s32.totalorder %s39, 1
          %s476 = scalar_select %p475, %s39, 1
          %s477 = smul.addr %s476, 4
          %s478 = smul.addr %s477, 4
          %s479 = scalar_lea.vmem %s5, %s478
        $region40: #{tpu_custom_call.1} parent=15 // pred_fallthru
          _
        // Predicated region
        $region41: #{tpu_custom_call.1} parent=15 // pred_check
          %p480 = pneg %p219
        $region42: #{tpu_custom_call.1} parent=15 // pred_check_branch
          %482 = sbr.rel (%p480) target = $region44
        $region43: #{tpu_custom_call.1} parent=15 // pred_region
          %p483 = scmp.lt.s32.totalorder %s39, 1
          %s484 = scalar_select %p483, %s39, 1
          %s485 = scalar_lea.vmem %s6, %s484
        $region44: #{tpu_custom_call.1} parent=15 // pred_fallthru
          _
        // Predicated region
        $region45: #{tpu_custom_call.1} parent=15 // pred_check
          %p486 = pneg %p245
        $region46: #{tpu_custom_call.1} parent=15 // pred_check_branch
          %488 = sbr.rel (%p486) target = $region48
        $region47: #{tpu_custom_call.1} parent=15 // pred_region
          %p489 = scmp.lt.s32.totalorder %s39, 1
          %s490 = scalar_select %p489, %s39, 1
          %s491 = scalar_lea.vmem %s7, %s490
        $region48: #{tpu_custom_call.1} parent=15 // pred_fallthru
          _
        // Predicated region
        $region49: #{tpu_custom_call.1} parent=15 // pred_check
          %p492 = pneg %p271
        $region50: #{tpu_custom_call.1} parent=15 // pred_check_branch
          %494 = sbr.rel (%p492) target = $region52
        $region51: #{tpu_custom_call.1} parent=15 // pred_region
          %s495 = sand.u32 %s31, 1
          %s496 = scalar_lea.sflag [#allocation8], %s495
          %s497 = sand.u32 %s261, 1
          %s498 = scalar_lea.vmem [#allocation7], %s497
          %s500 = ssub.s32 16, 16
          %501 = vsyncadd %s496, %s500
          %s502 = smul.addr %s39, 16
          %s503 = scalar_lea.hbm %s8, %s502
          %s505 = sshll.u32 %s498, 4
          %s506 = int_to_ptr.vmem [resolvable:$true] %s505
          %508 = dma.hbm_to_vmem [thread:$0]  %s503, 16, %s506, %s496
        $region52: #{tpu_custom_call.1} parent=15 // pred_fallthru
          _
        // Predicated region
        $region53: #{tpu_custom_call.1} parent=15 // pred_check
          %p509 = pneg %p297
        $region54: #{tpu_custom_call.1} parent=15 // pred_check_branch
          %511 = sbr.rel (%p509) target = $region56
        $region55: #{tpu_custom_call.1} parent=15 // pred_region
          %s512 = sand.u32 %s31, 1
          %s513 = scalar_lea.sflag [#allocation8], %s512
          %s514 = sand.u32 %s287, 1
          %s515 = smul.addr %s514, 16
          %s516 = scalar_lea.vmem [#allocation9], %s515
          %s518 = ssub.s32 256, 256
          %519 = vsyncadd %s513, %s518
          %s520 = smul.addr %s39, 4
          %s521 = smul.addr %s520, 64
          %s522 = scalar_lea.hbm %s9, %s521
          %s523 = sshll.u32 %s516, 4
          %s524 = int_to_ptr.vmem [resolvable:$true] %s523
          %529 = dma.hbm_to_vmem [thread:$0]  %s522, 256, %s524, %s513, 64, 64, 4
        $region56: #{tpu_custom_call.1} parent=15 // pred_fallthru
          _
        // Predicated region
        $region57: #{tpu_custom_call.1} parent=15 // pred_check
          %p530 = pneg %p323
        $region58: #{tpu_custom_call.1} parent=15 // pred_check_branch
          %532 = sbr.rel (%p530) target = $region60
        $region59: #{tpu_custom_call.1} parent=15 // pred_region
          %s533 = sand.u32 %s313, 1
          %s534 = scalar_lea.sflag [#allocation11], %s533
          %s535 = sand.u32 %s313, 1
          %s536 = scalar_lea.vmem [#allocation10], %s535
          %s538 = ssub.s32 16, 16
          %539 = vsyncadd %s534, %s538
          %s540 = smul.addr %s39, 16
          %s541 = scalar_lea.hbm %s10, %s540
          %s543 = sshll.u32 %s536, 4
          %s544 = int_to_ptr.vmem [resolvable:$true] %s543
          %546 = dma.hbm_to_vmem [thread:$0]  %s541, 16, %s544, %s534
        $region60: #{tpu_custom_call.1} parent=15 // pred_fallthru
          _
        // Predicated region
        $region61: #{tpu_custom_call.1} parent=15 // pred_check
          %p547 = pneg %p349
        $region62: #{tpu_custom_call.1} parent=15 // pred_check_branch
          %549 = sbr.rel (%p547) target = $region64
        $region63: #{tpu_custom_call.1} parent=15 // pred_region
          %p550 = scmp.lt.s32.totalorder %s39, 1
          %s551 = scalar_select %p550, %s39, 1
          %s552 = smul.addr %s551, 8
          %s553 = smul.addr %s552, 4
          %s554 = scalar_lea.vmem %s11, %s553
        $region64: #{tpu_custom_call.1} parent=15 // pred_fallthru
          _
        // Predicated region
        $region65: #{tpu_custom_call.1} parent=15 // pred_check
          %p555 = pneg %p375
        $region66: #{tpu_custom_call.1} parent=15 // pred_check_branch
          %557 = sbr.rel (%p555) target = $region68
        $region67: #{tpu_custom_call.1} parent=15 // pred_region
          %p558 = scmp.lt.s32.totalorder %s39, 1
          %s559 = scalar_select %p558, %s39, 1
          %s560 = scalar_lea.vmem %s12, %s559
        $region68: #{tpu_custom_call.1} parent=15 // pred_fallthru
          _
      $region16: #{tpu_custom_call.1} parent=5 // pred_fallthru
        _
      %p561 = scmp.le.s32.totalorder 1, %s31
      %p562 = scmp.lt.s32.totalorder %s31, 5
      %p563 = pnand %p561, %p562
      %p564 = pneg %p563
      // Predicated region
      $region69: #{tpu_custom_call.1} parent=5 // pred_check
        _
      $region70: #{tpu_custom_call.1} parent=5 // pred_check_branch
        %566 = sbr.rel (%p563) target = $region72
      $region71: #{tpu_custom_call.1} parent=5 // pred_region
        %s567 = ssub.s32 %s31, 1
        %s568 = sand.u32 %s56, 1
        %s569 = scalar_lea.sflag [#allocation5], %s568
        %s570 = sand.u32 %s56, 1
        %s571 = smul.addr %s570, 8
        %s572 = scalar_lea.vmem [#allocation4], %s571
        // Predicated region
        $region73: #{tpu_custom_call.1} parent=71 // pred_check
          %p573 = pneg %p69
        $region74: #{tpu_custom_call.1} parent=71 // pred_check_branch
          %575 = sbr.rel (%p573) target = $region76
        $region75: #{tpu_custom_call.1} parent=71 // pred_region
          %576 = dma.done %s569, 128
        $region76: #{tpu_custom_call.1} parent=71 // pred_fallthru
          _
        %s577 = sand.u32 %s36, 1
        %s578 = scalar_lea.sflag [#allocation8], %s577
        %s579 = sand.u32 %s264, 1
        %s580 = scalar_lea.vmem [#allocation7], %s579
        // Predicated region
        $region77: #{tpu_custom_call.1} parent=71 // pred_check
          %p581 = pneg %p277
        $region78: #{tpu_custom_call.1} parent=71 // pred_check_branch
          %583 = sbr.rel (%p581) target = $region80
        $region79: #{tpu_custom_call.1} parent=71 // pred_region
          %584 = dma.done %s578, 16
        $region80: #{tpu_custom_call.1} parent=71 // pred_fallthru
          _
        %s585 = sand.u32 %s36, 1
        %s586 = scalar_lea.sflag [#allocation8], %s585
        %s587 = sand.u32 %s290, 1
        %s588 = smul.addr %s587, 16
        %s589 = scalar_lea.vmem [#allocation9], %s588
        // Predicated region
        $region81: #{tpu_custom_call.1} parent=71 // pred_check
          %p590 = pneg %p303
        $region82: #{tpu_custom_call.1} parent=71 // pred_check_branch
          %592 = sbr.rel (%p590) target = $region84
        $region83: #{tpu_custom_call.1} parent=71 // pred_region
          %593 = dma.done %s586, 256
        $region84: #{tpu_custom_call.1} parent=71 // pred_fallthru
          _
        %s594 = sand.u32 %s316, 1
        %s595 = scalar_lea.sflag [#allocation11], %s594
        %s596 = sand.u32 %s316, 1
        %s597 = scalar_lea.vmem [#allocation10], %s596
        // Predicated region
        $region85: #{tpu_custom_call.1} parent=71 // pred_check
          %p598 = pneg %p329
        $region86: #{tpu_custom_call.1} parent=71 // pred_check_branch
          %600 = sbr.rel (%p598) target = $region88
        $region87: #{tpu_custom_call.1} parent=71 // pred_region
          %601 = dma.done %s595, 16
        $region88: #{tpu_custom_call.1} parent=71 // pred_fallthru
          _
        %s602 = sand.u32 %s56, 1
        %s603 = scalar_lea.sflag [#allocation5], %s602
        %s604 = sand.u32 %s56, 1
        %s605 = smul.addr %s604, 8
        %s606 = scalar_lea.vmem [#allocation4], %s605
        %p607 = pneg %p69
        %p608 = pneg %p66
        %p609 = scmp.lt.s32.totalorder %s41, 1
        %s610 = scalar_select %p609, %s41, 1
        %s611 = scalar_lea.vmem %s1, %s610
        %p612 = pneg %p95
        %p613 = pneg %p92
        %p614 = scmp.lt.s32.totalorder %s41, 1
        %s615 = scalar_select %p614, %s41, 1
        %s616 = scalar_lea.vmem %s2, %s615
        %p617 = pneg %p121
        %p618 = pneg %p118
        %p619 = scmp.lt.s32.totalorder %s41, 1
        %s620 = scalar_select %p619, %s41, 1
        %s621 = smul.addr %s620, 4
        %s622 = smul.addr %s621, 4
        %s623 = scalar_lea.vmem %s3, %s622
        %p624 = pneg %p147
        %p625 = pneg %p144
        %p626 = scmp.lt.s32.totalorder %s41, 1
        %s627 = scalar_select %p626, %s41, 1
        %s628 = smul.addr %s627, 4
        %s629 = smul.addr %s628, 4
        %s630 = scalar_lea.vmem %s4, %s629
        %p631 = pneg %p173
        %p632 = pneg %p170
        %p633 = scmp.lt.s32.totalorder %s41, 1
        %s634 = scalar_select %p633, %s41, 1
        %s635 = smul.addr %s634, 4
        %s636 = smul.addr %s635, 4
        %s637 = scalar_lea.vmem %s5, %s636
        %p638 = pneg %p199
        %p639 = pneg %p196
        %p640 = scmp.lt.s32.totalorder %s41, 1
        %s641 = scalar_select %p640, %s41, 1
        %s642 = scalar_lea.vmem %s6, %s641
        %p643 = pneg %p225
        %p644 = pneg %p222
        %p645 = scmp.lt.s32.totalorder %s41, 1
        %s646 = scalar_select %p645, %s41, 1
        %s647 = scalar_lea.vmem %s7, %s646
        %p648 = pneg %p251
        %p649 = pneg %p248
        %s650 = sand.u32 %s36, 1
        %s651 = scalar_lea.sflag [#allocation8], %s650
        %s652 = sand.u32 %s264, 1
        %s653 = scalar_lea.vmem [#allocation7], %s652
        %p654 = pneg %p277
        %p655 = pneg %p274
        %s656 = sand.u32 %s36, 1
        %s657 = scalar_lea.sflag [#allocation8], %s656
        %s658 = sand.u32 %s290, 1
        %s659 = smul.addr %s658, 16
        %s660 = scalar_lea.vmem [#allocation9], %s659
        %p661 = pneg %p303
        %p662 = pneg %p300
        %s663 = sand.u32 %s316, 1
        %s664 = scalar_lea.sflag [#allocation11], %s663
        %s665 = sand.u32 %s316, 1
        %s666 = scalar_lea.vmem [#allocation10], %s665
        %p667 = pneg %p329
        %p668 = pneg %p326
        %p669 = scmp.lt.s32.totalorder %s41, 1
        %s670 = scalar_select %p669, %s41, 1
        %s671 = smul.addr %s670, 8
        %s672 = smul.addr %s671, 4
        %s673 = scalar_lea.vmem %s11, %s672
        %p674 = pneg %p355
        %p675 = pneg %p352
        %p676 = scmp.lt.s32.totalorder %s41, 1
        %s677 = scalar_select %p676, %s41, 1
        %s678 = scalar_lea.vmem %s12, %s677
        %p679 = pneg %p381
        %p680 = pneg %p378
        %p681 = pneg %p407
        %p682 = pneg %p404
        %s683 = sand.u32 %s394, 1
        %s684 = scalar_lea.sflag [#allocation6], %s683
        %s685 = sand.u32 %s394, 1
        %s686 = smul.addr %s685, 8
        %s687 = scalar_lea.vmem [#allocation12], %s686
        %p688 = scmp.lt.s32.totalorder %s41, 1
        %s689 = scalar_select %p688, %s41, 1
        %s690 = scalar_lea.vmem %s1, %s689
        %p691 = scmp.lt.s32.totalorder %s41, 1
        %s692 = scalar_select %p691, %s41, 1
        %s693 = scalar_lea.vmem %s2, %s692
        %p694 = scmp.lt.s32.totalorder %s41, 1
        %s695 = scalar_select %p694, %s41, 1
        %s696 = smul.addr %s695, 4
        %s697 = smul.addr %s696, 4
        %s698 = scalar_lea.vmem %s3, %s697
        %p699 = scmp.lt.s32.totalorder %s41, 1
        %s700 = scalar_select %p699, %s41, 1
        %s701 = smul.addr %s700, 4
        %s702 = smul.addr %s701, 4
        %s703 = scalar_lea.vmem %s4, %s702
        %p704 = scmp.lt.s32.totalorder %s41, 1
        %s705 = scalar_select %p704, %s41, 1
        %s706 = smul.addr %s705, 4
        %s707 = smul.addr %s706, 4
        %s708 = scalar_lea.vmem %s5, %s707
        %p709 = scmp.lt.s32.totalorder %s41, 1
        %s710 = scalar_select %p709, %s41, 1
        %s711 = scalar_lea.vmem %s6, %s710
        %p712 = scmp.lt.s32.totalorder %s41, 1
        %s713 = scalar_select %p712, %s41, 1
        %s714 = scalar_lea.vmem %s7, %s713
        %p715 = scmp.lt.s32.totalorder %s41, 1
        %s716 = scalar_select %p715, %s41, 1
        %s717 = smul.addr %s716, 8
        %s718 = smul.addr %s717, 4
        %s719 = scalar_lea.vmem %s11, %s718
        %p720 = scmp.lt.s32.totalorder %s41, 1
        %s721 = scalar_select %p720, %s41, 1
        %s722 = scalar_lea.vmem %s12, %s721
        %p724 = scmp.eq.s32.totalorder %s41, 0
        // Predicated region
        $region89: #{tpu_custom_call.1} parent=71 // pred_check
          %p725 = pneg %p724
        $region90: #{tpu_custom_call.1} parent=71 // pred_check_branch
          %727 = sbr.rel (%p725) target = $region92
        $region91: #{tpu_custom_call.1} parent=71 // pred_region
          %v728 = vld [vmem:[%s572] sm:$0xff]
          %vm729 = vcmask 261120
          %730 = vst.msk [vmem:[#allocation2] sm:$0xff] %vm729, %v728
        $region92: #{tpu_custom_call.1} parent=71 // pred_fallthru
          _
        %v731 = vld [vmem:[#allocation2] sm:$0xff]
        %v732 = vld [vmem:[%s690] sm:$0x1]
        %v733 = vld [vmem:[%s693] sm:$0x1]
        %vm734 = vcmask 261120
        %v735 = vsel %vm734, %v731, 0.0
        %736 = vadd.xlane.f32.xlu0 %v735
        %v737 = vpop.xlane.xlu0 %736
        %v738 = vrcp.pop 32.0
        %v739 = vmul.f32 %v737, %v738
        %v740 = vsub.f32 %v731, %v739
        %v741 = vmul.f32 %v740, %v740
        %v742 = vsel %vm734, %v741, 0.0
        %743 = vadd.xlane.f32.xlu0 %v742
        %v744 = vpop.xlane.xlu0 %743
        %v745 = vmul.f32 %v744, %v738
        %v746 = vadd.f32 %v745, 1e-05
        %v747 = vrsqrt.pop %v746
        %v748 = vmul.f32 %v740, %v747
        %v750 = vlaneseq
        %v751 = vshrl.u32 %v750, 7
        %v752 = vsub.s32 0, %v751
        %v753 = vrot.slane %v732, %v752
        %v755 = vmul.f32 %v748, %v753
        %v757 = vlaneseq
        %v758 = vshrl.u32 %v757, 7
        %v759 = vsub.s32 0, %v758
        %v760 = vrot.slane %v733, %v759
        %v762 = vadd.f32 %v755, %v760
        %v763 = vpack.c.bf16 %v762, %v762
        %v764 = vld [vmem:[%s698] sm:$0xf]
        %v765 = vld [vmem:[%s698 + $0x4] sm:$0xf]
        %v766 = vld [vmem:[%s698 + $0x8] sm:$0xf]
        %v767 = vld [vmem:[%s698 + $0xc] sm:$0xf]
        %v772 = vunpack.c.l.b16 %v764
        %v773 = vunpack.c.l.b16 %v765
        %v774 = vunpack.c.l.b16 %v766
        %v775 = vunpack.c.l.b16 %v767
        %v776 = vpack.c.b16 %v773, %v772
        %v777 = vpack.c.b16 %v775, %v774
        %v781 = vsel %vm734, %v763, 0
        %783 = vmatprep.subr.bf16.mxu0 0
        %784 = vmatpush1.bf16.msra.mxu0 %v776
        %785 = vmatprep.subr.bf16.mxu0 0
        %786 = vmatpush1.bf16.msra.mxu0 %v777
        %787 = vmatprep.subr.bf16.mxu0 0
        %788 = vmatpush1.bf16.msra.mxu0 0
        %789 = vmatprep.subr.bf16.mxu0 0
        %790 = vmatpush1.bf16.msra.mxu0 0
        %791 = vmatprep.subr.bf16.mxu0 0
        %792 = vmatpush1.bf16.msra.mxu0 0
        %793 = vmatprep.subr.bf16.mxu0 0
        %794 = vmatpush1.bf16.msra.mxu0 0
        %795 = vmatprep.subr.bf16.mxu0 0
        %796 = vmatpush1.bf16.msra.mxu0 0
        %797 = vmatprep.subr.bf16.mxu0 0
        %798 = vmatpush1.bf16.msra.mxu0 0
        %799 = vmatprep.subr.bf16.mxu0 0
        %800 = vmatpush1.bf16.msra.mxu0 0
        %801 = vmatprep.subr.bf16.mxu0 0
        %802 = vmatpush1.bf16.msra.mxu0 0
        %803 = vmatprep.subr.bf16.mxu0 0
        %804 = vmatpush1.bf16.msra.mxu0 0
        %805 = vmatprep.subr.bf16.mxu0 0
        %806 = vmatpush1.bf16.msra.mxu0 0
        %807 = vmatprep.subr.bf16.mxu0 0
        %808 = vmatpush1.bf16.msra.mxu0 0
        %809 = vmatprep.subr.bf16.mxu0 0
        %810 = vmatpush1.bf16.msra.mxu0 0
        %811 = vmatprep.subr.bf16.mxu0 0
        %812 = vmatpush1.bf16.msra.mxu0 0
        %813 = vmatprep.subr.bf16.mxu0 0
        %814 = vmatpush1.bf16.msra.mxu0 0
        %815 = vmatprep.mubr.bf16.mxu0 0
        %816 = vmatmul.mubr.bf16.gmra.mrb[0].mxu0 %v781
        %v817 = vpop.f32.mrb[0].mxu0
        %v818 = vadd.f32 0.0, %v817
        %v819 = vpop.f32.mrb[0].mxu0
        %v820 = vpop.f32.mrb[0].mxu0
        %v821 = vpop.f32.mrb[0].mxu0
        %822 = vdwg.mxu0
        %v823 = vld [vmem:[%s703] sm:$0xf]
        %v824 = vld [vmem:[%s703 + $0x4] sm:$0xf]
        %v825 = vld [vmem:[%s703 + $0x8] sm:$0xf]
        %v826 = vld [vmem:[%s703 + $0xc] sm:$0xf]
        %v831 = vunpack.c.l.b16 %v823
        %v832 = vunpack.c.l.b16 %v824
        %v833 = vunpack.c.l.b16 %v825
        %v834 = vunpack.c.l.b16 %v826
        %v835 = vpack.c.b16 %v832, %v831
        %v836 = vpack.c.b16 %v834, %v833
        %839 = vmatprep.subr.bf16.mxu0 0
        %840 = vmatpush1.bf16.msra.mxu0 %v835
        %841 = vmatprep.subr.bf16.mxu0 0
        %842 = vmatpush1.bf16.msra.mxu0 %v836
        %843 = vmatprep.subr.bf16.mxu0 0
        %844 = vmatpush1.bf16.msra.mxu0 0
        %845 = vmatprep.subr.bf16.mxu0 0
        %846 = vmatpush1.bf16.msra.mxu0 0
        %847 = vmatprep.subr.bf16.mxu0 0
        %848 = vmatpush1.bf16.msra.mxu0 0
        %849 = vmatprep.subr.bf16.mxu0 0
        %850 = vmatpush1.bf16.msra.mxu0 0
        %851 = vmatprep.subr.bf16.mxu0 0
        %852 = vmatpush1.bf16.msra.mxu0 0
        %853 = vmatprep.subr.bf16.mxu0 0
        %854 = vmatpush1.bf16.msra.mxu0 0
        %855 = vmatprep.subr.bf16.mxu0 0
        %856 = vmatpush1.bf16.msra.mxu0 0
        %857 = vmatprep.subr.bf16.mxu0 0
        %858 = vmatpush1.bf16.msra.mxu0 0
        %859 = vmatprep.subr.bf16.mxu0 0
        %860 = vmatpush1.bf16.msra.mxu0 0
        %861 = vmatprep.subr.bf16.mxu0 0
        %862 = vmatpush1.bf16.msra.mxu0 0
        %863 = vmatprep.subr.bf16.mxu0 0
        %864 = vmatpush1.bf16.msra.mxu0 0
        %865 = vmatprep.subr.bf16.mxu0 0
        %866 = vmatpush1.bf16.msra.mxu0 0
        %867 = vmatprep.subr.bf16.mxu0 0
        %868 = vmatpush1.bf16.msra.mxu0 0
        %869 = vmatprep.subr.bf16.mxu0 0
        %870 = vmatpush1.bf16.msra.mxu0 0
        %871 = vmatprep.mubr.bf16.mxu0 0
        %872 = vmatmul.mubr.bf16.gmra.mrb[0].mxu0 %v781
        %v873 = vpop.f32.mrb[0].mxu0
        %v874 = vadd.f32 0.0, %v873
        %v875 = vpop.f32.mrb[0].mxu0
        %v876 = vpop.f32.mrb[0].mxu0
        %v877 = vpop.f32.mrb[0].mxu0
        %878 = vdwg.mxu0
        %v879 = vpack.c.bf16 %v818, %v818
        %v880 = vpack.c.bf16 %v874, %v874
        %vm881 = vcmask 64512
        %v883 = vsel %vm881, %v879, 0
        %v886 = vsel %vm881, %v880, 0
        %888 = vmatprep.subr.bf16.mxu0 0
        %889 = vmatpush1.bf16.xpose.msra.mxu0 %v886
        %890 = vmatprep.subr.bf16.mxu0 0
        %891 = vmatpush1.bf16.xpose.msra.mxu0 0
        %892 = vmatprep.subr.bf16.mxu0 0
        %893 = vmatpush1.bf16.xpose.msra.mxu0 0
        %894 = vmatprep.subr.bf16.mxu0 0
        %895 = vmatpush1.bf16.xpose.msra.mxu0 0
        %896 = vmatprep.subr.bf16.mxu0 0
        %897 = vmatpush1.bf16.xpose.msra.mxu0 0
        %898 = vmatprep.subr.bf16.mxu0 0
        %899 = vmatpush1.bf16.xpose.msra.mxu0 0
        %900 = vmatprep.subr.bf16.mxu0 0
        %901 = vmatpush1.bf16.xpose.msra.mxu0 0
        %902 = vmatprep.subr.bf16.mxu0 0
        %903 = vmatpush1.bf16.xpose.msra.mxu0 0
        %904 = vmatprep.subr.bf16.mxu0 0
        %905 = vmatpush1.bf16.xpose.msra.mxu0 0
        %906 = vmatprep.subr.bf16.mxu0 0
        %907 = vmatpush1.bf16.xpose.msra.mxu0 0
        %908 = vmatprep.subr.bf16.mxu0 0
        %909 = vmatpush1.bf16.xpose.msra.mxu0 0
        %910 = vmatprep.subr.bf16.mxu0 0
        %911 = vmatpush1.bf16.xpose.msra.mxu0 0
        %912 = vmatprep.subr.bf16.mxu0 0
        %913 = vmatpush1.bf16.xpose.msra.mxu0 0
        %914 = vmatprep.subr.bf16.mxu0 0
        %915 = vmatpush1.bf16.xpose.msra.mxu0 0
        %916 = vmatprep.subr.bf16.mxu0 0
        %917 = vmatpush1.bf16.xpose.msra.mxu0 0
        %918 = vmatprep.subr.bf16.mxu0 0
        %919 = vmatpush1.bf16.xpose.msra.mxu0 0
        %920 = vmatprep.mubr.bf16.mxu0 0
        %921 = vmatmul.mubr.bf16.gmra.mrb[0].mxu0 %v883
        %v922 = vpop.f32.mrb[0].mxu0
        %v923 = vadd.f32 0.0, %v922
        %v924 = vpop.f32.mrb[0].mxu0
        %v925 = vpop.f32.mrb[0].mxu0
        %v926 = vpop.f32.mrb[0].mxu0
        %927 = vdwg.mxu0
        %v928 = vsel %vm881, %v923, -inf
        %929 = vmax.xlane.f32.xlu0 %v928
        %v930 = vpop.xlane.xlu0 %929
        %v931 = vsub.f32 %v923, %v930
        %v932 = vmul.f32 %v931, 1.442695
        %v933 = vpow.pop %v932
        %v934 = vsel %vm881, %v933, 0.0
        %935 = vadd.xlane.f32.xlu0 %v934
        %v936 = vpop.xlane.xlu0 %935
        %v937 = vrcp.pop %v936
        %v938 = vmul.f32 %v933, %v937
        %v939 = vpack.c.bf16 %v938, %v938
        %941 = vrot.lane.b32.xlu0 %v880, 96
        %v942 = vpop.permute.xlu0 %941
        %v944 = vsel %vm881, %v939, 0
        %vm946 = vcmask 1043456
        %v948 = vsel %vm946, %v942, 0
        %950 = vmatprep.subr.bf16.mxu0 0
        %951 = vmatpush1.bf16.msra.mxu0 %v948
        %952 = vmatprep.subr.bf16.mxu0 0
        %953 = vmatpush1.bf16.msra.mxu0 0
        %954 = vmatprep.subr.bf16.mxu0 0
        %955 = vmatpush1.bf16.msra.mxu0 0
        %956 = vmatprep.subr.bf16.mxu0 0
        %957 = vmatpush1.bf16.msra.mxu0 0
        %958 = vmatprep.subr.bf16.mxu0 0
        %959 = vmatpush1.bf16.msra.mxu0 0
        %960 = vmatprep.subr.bf16.mxu0 0
        %961 = vmatpush1.bf16.msra.mxu0 0
        %962 = vmatprep.subr.bf16.mxu0 0
        %963 = vmatpush1.bf16.msra.mxu0 0
        %964 = vmatprep.subr.bf16.mxu0 0
        %965 = vmatpush1.bf16.msra.mxu0 0
        %966 = vmatprep.subr.bf16.mxu0 0
        %967 = vmatpush1.bf16.msra.mxu0 0
        %968 = vmatprep.subr.bf16.mxu0 0
        %969 = vmatpush1.bf16.msra.mxu0 0
        %970 = vmatprep.subr.bf16.mxu0 0
        %971 = vmatpush1.bf16.msra.mxu0 0
        %972 = vmatprep.subr.bf16.mxu0 0
        %973 = vmatpush1.bf16.msra.mxu0 0
        %974 = vmatprep.subr.bf16.mxu0 0
        %975 = vmatpush1.bf16.msra.mxu0 0
        %976 = vmatprep.subr.bf16.mxu0 0
        %977 = vmatpush1.bf16.msra.mxu0 0
        %978 = vmatprep.subr.bf16.mxu0 0
        %979 = vmatpush1.bf16.msra.mxu0 0
        %980 = vmatprep.subr.bf16.mxu0 0
        %981 = vmatpush1.bf16.msra.mxu0 0
        %982 = vmatprep.mubr.bf16.mxu0 0
        %983 = vmatmul.mubr.bf16.gmra.mrb[0].mxu0 %v944
        %v984 = vpop.f32.mrb[0].mxu0
        %v985 = vadd.f32 0.0, %v984
        %v986 = vpop.f32.mrb[0].mxu0
        %v987 = vpop.f32.mrb[0].mxu0
        %v988 = vpop.f32.mrb[0].mxu0
        %989 = vdwg.mxu0
        %990 = vst.msk [vmem:[#allocation3] sm:$0xff] %vm881, %v985
        %992 = vrot.lane.b32.xlu0 %v879, 120
        %v993 = vpop.permute.xlu0 %992
        %994 = vrot.lane.b32.xlu0 %v880, 120
        %v995 = vpop.permute.xlu0 %994
        %v997 = vsel %vm881, %v993, 0
        %v1000 = vsel %vm881, %v995, 0
        %1002 = vmatprep.subr.bf16.mxu0 0
        %1003 = vmatpush1.bf16.xpose.msra.mxu0 %v1000
        %1004 = vmatprep.subr.bf16.mxu0 0
        %1005 = vmatpush1.bf16.xpose.msra.mxu0 0
        %1006 = vmatprep.subr.bf16.mxu0 0
        %1007 = vmatpush1.bf16.xpose.msra.mxu0 0
        %1008 = vmatprep.subr.bf16.mxu0 0
        %1009 = vmatpush1.bf16.xpose.msra.mxu0 0
        %1010 = vmatprep.subr.bf16.mxu0 0
        %1011 = vmatpush1.bf16.xpose.msra.mxu0 0
        %1012 = vmatprep.subr.bf16.mxu0 0
        %1013 = vmatpush1.bf16.xpose.msra.mxu0 0
        %1014 = vmatprep.subr.bf16.mxu0 0
        %1015 = vmatpush1.bf16.xpose.msra.mxu0 0
        %1016 = vmatprep.subr.bf16.mxu0 0
        %1017 = vmatpush1.bf16.xpose.msra.mxu0 0
        %1018 = vmatprep.subr.bf16.mxu0 0
        %1019 = vmatpush1.bf16.xpose.msra.mxu0 0
        %1020 = vmatprep.subr.bf16.mxu0 0
        %1021 = vmatpush1.bf16.xpose.msra.mxu0 0
        %1022 = vmatprep.subr.bf16.mxu0 0
        %1023 = vmatpush1.bf16.xpose.msra.mxu0 0
        %1024 = vmatprep.subr.bf16.mxu0 0
        %1025 = vmatpush1.bf16.xpose.msra.mxu0 0
        %1026 = vmatprep.subr.bf16.mxu0 0
        %1027 = vmatpush1.bf16.xpose.msra.mxu0 0
        %1028 = vmatprep.subr.bf16.mxu0 0
        %1029 = vmatpush1.bf16.xpose.msra.mxu0 0
        %1030 = vmatprep.subr.bf16.mxu0 0
        %1031 = vmatpush1.bf16.xpose.msra.mxu0 0
        %1032 = vmatprep.subr.bf16.mxu0 0
        %1033 = vmatpush1.bf16.xpose.msra.mxu0 0
        %1034 = vmatprep.mubr.bf16.mxu0 0
        %1035 = vmatmul.mubr.bf16.gmra.mrb[0].mxu0 %v997
        %v1036 = vpop.f32.mrb[0].mxu0
        %v1037 = vadd.f32 0.0, %v1036
        %v1038 = vpop.f32.mrb[0].mxu0
        %v1039 = vpop.f32.mrb[0].mxu0
        %v1040 = vpop.f32.mrb[0].mxu0
        %1041 = vdwg.mxu0
        %v1042 = vsel %vm881, %v1037, -inf
        %1043 = vmax.xlane.f32.xlu0 %v1042
        %v1044 = vpop.xlane.xlu0 %1043
        %v1045 = vsub.f32 %v1037, %v1044
        %v1046 = vmul.f32 %v1045, 1.442695
        %v1047 = vpow.pop %v1046
        %v1048 = vsel %vm881, %v1047, 0.0
        %1049 = vadd.xlane.f32.xlu0 %v1048
        %v1050 = vpop.xlane.xlu0 %1049
        %v1051 = vrcp.pop %v1050
        %v1052 = vmul.f32 %v1047, %v1051
        %v1053 = vpack.c.bf16 %v1052, %v1052
        %1054 = vrot.lane.b32.xlu0 %v880, 88
        %v1055 = vpop.permute.xlu0 %1054
        %v1057 = vsel %vm881, %v1053, 0
        %v1060 = vsel %vm946, %v1055, 0
        %1062 = vmatprep.subr.bf16.mxu0 0
        %1063 = vmatpush1.bf16.msra.mxu0 %v1060
        %1064 = vmatprep.subr.bf16.mxu0 0
        %1065 = vmatpush1.bf16.msra.mxu0 0
        %1066 = vmatprep.subr.bf16.mxu0 0
        %1067 = vmatpush1.bf16.msra.mxu0 0
        %1068 = vmatprep.subr.bf16.mxu0 0
        %1069 = vmatpush1.bf16.msra.mxu0 0
        %1070 = vmatprep.subr.bf16.mxu0 0
        %1071 = vmatpush1.bf16.msra.mxu0 0
        %1072 = vmatprep.subr.bf16.mxu0 0
        %1073 = vmatpush1.bf16.msra.mxu0 0
        %1074 = vmatprep.subr.bf16.mxu0 0
        %1075 = vmatpush1.bf16.msra.mxu0 0
        %1076 = vmatprep.subr.bf16.mxu0 0
        %1077 = vmatpush1.bf16.msra.mxu0 0
        %1078 = vmatprep.subr.bf16.mxu0 0
        %1079 = vmatpush1.bf16.msra.mxu0 0
        %1080 = vmatprep.subr.bf16.mxu0 0
        %1081 = vmatpush1.bf16.msra.mxu0 0
        %1082 = vmatprep.subr.bf16.mxu0 0
        %1083 = vmatpush1.bf16.msra.mxu0 0
        %1084 = vmatprep.subr.bf16.mxu0 0
        %1085 = vmatpush1.bf16.msra.mxu0 0
        %1086 = vmatprep.subr.bf16.mxu0 0
        %1087 = vmatpush1.bf16.msra.mxu0 0
        %1088 = vmatprep.subr.bf16.mxu0 0
        %1089 = vmatpush1.bf16.msra.mxu0 0
        %1090 = vmatprep.subr.bf16.mxu0 0
        %1091 = vmatpush1.bf16.msra.mxu0 0
        %1092 = vmatprep.subr.bf16.mxu0 0
        %1093 = vmatpush1.bf16.msra.mxu0 0
        %1094 = vmatprep.mubr.bf16.mxu0 0
        %1095 = vmatmul.mubr.bf16.gmra.mrb[0].mxu0 %v1057
        %v1096 = vpop.f32.mrb[0].mxu0
        %v1097 = vadd.f32 0.0, %v1096
        %v1098 = vpop.f32.mrb[0].mxu0
        %v1099 = vpop.f32.mrb[0].mxu0
        %v1100 = vpop.f32.mrb[0].mxu0
        %1101 = vdwg.mxu0
        %1103 = vrot.lane.b32.xlu0 %v1097, 8
        %v1104 = vpop.permute.xlu0 %1103
        %vm1106 = vcmask 130112
        %1107 = vst.msk [vmem:[#allocation3] sm:$0xff] %vm1106, %v1104
        %1108 = vrot.lane.b32.xlu0 %v879, 112
        %v1109 = vpop.permute.xlu0 %1108
        %1110 = vrot.lane.b32.xlu0 %v880, 112
        %v1111 = vpop.permute.xlu0 %1110
        %v1113 = vsel %vm881, %v1109, 0
        %v1116 = vsel %vm881, %v1111, 0
        %1118 = vmatprep.subr.bf16.mxu0 0
        %1119 = vmatpush1.bf16.xpose.msra.mxu0 %v1116
        %1120 = vmatprep.subr.bf16.mxu0 0
        %1121 = vmatpush1.bf16.xpose.msra.mxu0 0
        %1122 = vmatprep.subr.bf16.mxu0 0
        %1123 = vmatpush1.bf16.xpose.msra.mxu0 0
        %1124 = vmatprep.subr.bf16.mxu0 0
        %1125 = vmatpush1.bf16.xpose.msra.mxu0 0
        %1126 = vmatprep.subr.bf16.mxu0 0
        %1127 = vmatpush1.bf16.xpose.msra.mxu0 0
        %1128 = vmatprep.subr.bf16.mxu0 0
        %1129 = vmatpush1.bf16.xpose.msra.mxu0 0
        %1130 = vmatprep.subr.bf16.mxu0 0
        %1131 = vmatpush1.bf16.xpose.msra.mxu0 0
        %1132 = vmatprep.subr.bf16.mxu0 0
        %1133 = vmatpush1.bf16.xpose.msra.mxu0 0
        %1134 = vmatprep.subr.bf16.mxu0 0
        %1135 = vmatpush1.bf16.xpose.msra.mxu0 0
        %1136 = vmatprep.subr.bf16.mxu0 0
        %1137 = vmatpush1.bf16.xpose.msra.mxu0 0
        %1138 = vmatprep.subr.bf16.mxu0 0
        %1139 = vmatpush1.bf16.xpose.msra.mxu0 0
        %1140 = vmatprep.subr.bf16.mxu0 0
        %1141 = vmatpush1.bf16.xpose.msra.mxu0 0
        %1142 = vmatprep.subr.bf16.mxu0 0
        %1143 = vmatpush1.bf16.xpose.msra.mxu0 0
        %1144 = vmatprep.subr.bf16.mxu0 0
        %1145 = vmatpush1.bf16.xpose.msra.mxu0 0
        %1146 = vmatprep.subr.bf16.mxu0 0
        %1147 = vmatpush1.bf16.xpose.msra.mxu0 0
        %1148 = vmatprep.subr.bf16.mxu0 0
        %1149 = vmatpush1.bf16.xpose.msra.mxu0 0
        %1150 = vmatprep.mubr.bf16.mxu0 0
        %1151 = vmatmul.mubr.bf16.gmra.mrb[0].mxu0 %v1113
        %v1152 = vpop.f32.mrb[0].mxu0
        %v1153 = vadd.f32 0.0, %v1152
        %v1154 = vpop.f32.mrb[0].mxu0
        %v1155 = vpop.f32.mrb[0].mxu0
        %v1156 = vpop.f32.mrb[0].mxu0
        %1157 = vdwg.mxu0
        %v1158 = vsel %vm881, %v1153, -inf
        %1159 = vmax.xlane.f32.xlu0 %v1158
        %v1160 = vpop.xlane.xlu0 %1159
        %v1161 = vsub.f32 %v1153, %v1160
        %v1162 = vmul.f32 %v1161, 1.442695
        %v1163 = vpow.pop %v1162
        %v1164 = vsel %vm881, %v1163, 0.0
        %1165 = vadd.xlane.f32.xlu0 %v1164
        %v1166 = vpop.xlane.xlu0 %1165
        %v1167 = vrcp.pop %v1166
        %v1168 = vmul.f32 %v1163, %v1167
        %v1169 = vpack.c.bf16 %v1168, %v1168
        %1170 = vrot.lane.b32.xlu0 %v880, 80
        %v1171 = vpop.permute.xlu0 %1170
        %v1173 = vsel %vm881, %v1169, 0
        %v1176 = vsel %vm946, %v1171, 0
        %1178 = vmatprep.subr.bf16.mxu0 0
        %1179 = vmatpush1.bf16.msra.mxu0 %v1176
        %1180 = vmatprep.subr.bf16.mxu0 0
        %1181 = vmatpush1.bf16.msra.mxu0 0
        %1182 = vmatprep.subr.bf16.mxu0 0
        %1183 = vmatpush1.bf16.msra.mxu0 0
        %1184 = vmatprep.subr.bf16.mxu0 0
        %1185 = vmatpush1.bf16.msra.mxu0 0
        %1186 = vmatprep.subr.bf16.mxu0 0
        %1187 = vmatpush1.bf16.msra.mxu0 0
        %1188 = vmatprep.subr.bf16.mxu0 0
        %1189 = vmatpush1.bf16.msra.mxu0 0
        %1190 = vmatprep.subr.bf16.mxu0 0
        %1191 = vmatpush1.bf16.msra.mxu0 0
        %1192 = vmatprep.subr.bf16.mxu0 0
        %1193 = vmatpush1.bf16.msra.mxu0 0
        %1194 = vmatprep.subr.bf16.mxu0 0
        %1195 = vmatpush1.bf16.msra.mxu0 0
        %1196 = vmatprep.subr.bf16.mxu0 0
        %1197 = vmatpush1.bf16.msra.mxu0 0
        %1198 = vmatprep.subr.bf16.mxu0 0
        %1199 = vmatpush1.bf16.msra.mxu0 0
        %1200 = vmatprep.subr.bf16.mxu0 0
        %1201 = vmatpush1.bf16.msra.mxu0 0
        %1202 = vmatprep.subr.bf16.mxu0 0
        %1203 = vmatpush1.bf16.msra.mxu0 0
        %1204 = vmatprep.subr.bf16.mxu0 0
        %1205 = vmatpush1.bf16.msra.mxu0 0
        %1206 = vmatprep.subr.bf16.mxu0 0
        %1207 = vmatpush1.bf16.msra.mxu0 0
        %1208 = vmatprep.subr.bf16.mxu0 0
        %1209 = vmatpush1.bf16.msra.mxu0 0
        %1210 = vmatprep.mubr.bf16.mxu0 0
        %1211 = vmatmul.mubr.bf16.gmra.mrb[0].mxu0 %v1173
        %v1212 = vpop.f32.mrb[0].mxu0
        %v1213 = vadd.f32 0.0, %v1212
        %v1214 = vpop.f32.mrb[0].mxu0
        %v1215 = vpop.f32.mrb[0].mxu0
        %v1216 = vpop.f32.mrb[0].mxu0
        %1217 = vdwg.mxu0
        %1219 = vrot.lane.b32.xlu0 %v1213, 16
        %v1220 = vpop.permute.xlu0 %1219
        %vm1222 = vcmask 195712
        %1223 = vst.msk [vmem:[#allocation3] sm:$0xff] %vm1222, %v1220
        %1224 = vrot.lane.b32.xlu0 %v879, 104
        %v1225 = vpop.permute.xlu0 %1224
        %1226 = vrot.lane.b32.xlu0 %v880, 104
        %v1227 = vpop.permute.xlu0 %1226
        %v1229 = vsel %vm881, %v1225, 0
        %v1232 = vsel %vm881, %v1227, 0
        %1234 = vmatprep.subr.bf16.mxu0 0
        %1235 = vmatpush1.bf16.xpose.msra.mxu0 %v1232
        %1236 = vmatprep.subr.bf16.mxu0 0
        %1237 = vmatpush1.bf16.xpose.msra.mxu0 0
        %1238 = vmatprep.subr.bf16.mxu0 0
        %1239 = vmatpush1.bf16.xpose.msra.mxu0 0
        %1240 = vmatprep.subr.bf16.mxu0 0
        %1241 = vmatpush1.bf16.xpose.msra.mxu0 0
        %1242 = vmatprep.subr.bf16.mxu0 0
        %1243 = vmatpush1.bf16.xpose.msra.mxu0 0
        %1244 = vmatprep.subr.bf16.mxu0 0
        %1245 = vmatpush1.bf16.xpose.msra.mxu0 0
        %1246 = vmatprep.subr.bf16.mxu0 0
        %1247 = vmatpush1.bf16.xpose.msra.mxu0 0
        %1248 = vmatprep.subr.bf16.mxu0 0
        %1249 = vmatpush1.bf16.xpose.msra.mxu0 0
        %1250 = vmatprep.subr.bf16.mxu0 0
        %1251 = vmatpush1.bf16.xpose.msra.mxu0 0
        %1252 = vmatprep.subr.bf16.mxu0 0
        %1253 = vmatpush1.bf16.xpose.msra.mxu0 0
        %1254 = vmatprep.subr.bf16.mxu0 0
        %1255 = vmatpush1.bf16.xpose.msra.mxu0 0
        %1256 = vmatprep.subr.bf16.mxu0 0
        %1257 = vmatpush1.bf16.xpose.msra.mxu0 0
        %1258 = vmatprep.subr.bf16.mxu0 0
        %1259 = vmatpush1.bf16.xpose.msra.mxu0 0
        %1260 = vmatprep.subr.bf16.mxu0 0
        %1261 = vmatpush1.bf16.xpose.msra.mxu0 0
        %1262 = vmatprep.subr.bf16.mxu0 0
        %1263 = vmatpush1.bf16.xpose.msra.mxu0 0
        %1264 = vmatprep.subr.bf16.mxu0 0
        %1265 = vmatpush1.bf16.xpose.msra.mxu0 0
        %1266 = vmatprep.mubr.bf16.mxu0 0
        %1267 = vmatmul.mubr.bf16.gmra.mrb[0].mxu0 %v1229
        %v1268 = vpop.f32.mrb[0].mxu0
        %v1269 = vadd.f32 0.0, %v1268
        %v1270 = vpop.f32.mrb[0].mxu0
        %v1271 = vpop.f32.mrb[0].mxu0
        %v1272 = vpop.f32.mrb[0].mxu0
        %1273 = vdwg.mxu0
        %v1274 = vsel %vm881, %v1269, -inf
        %1275 = vmax.xlane.f32.xlu0 %v1274
        %v1276 = vpop.xlane.xlu0 %1275
        %v1277 = vsub.f32 %v1269, %v1276
        %v1278 = vmul.f32 %v1277, 1.442695
        %v1279 = vpow.pop %v1278
        %v1280 = vsel %vm881, %v1279, 0.0
        %1281 = vadd.xlane.f32.xlu0 %v1280
        %v1282 = vpop.xlane.xlu0 %1281
        %v1283 = vrcp.pop %v1282
        %v1284 = vmul.f32 %v1279, %v1283
        %v1285 = vpack.c.bf16 %v1284, %v1284
        %1286 = vrot.lane.b32.xlu0 %v880, 72
        %v1287 = vpop.permute.xlu0 %1286
        %v1289 = vsel %vm881, %v1285, 0
        %v1292 = vsel %vm946, %v1287, 0
        %1294 = vmatprep.subr.bf16.mxu0 0
        %1295 = vmatpush1.bf16.msra.mxu0 %v1292
        %1296 = vmatprep.subr.bf16.mxu0 0
        %1297 = vmatpush1.bf16.msra.mxu0 0
        %1298 = vmatprep.subr.bf16.mxu0 0
        %1299 = vmatpush1.bf16.msra.mxu0 0
        %1300 = vmatprep.subr.bf16.mxu0 0
        %1301 = vmatpush1.bf16.msra.mxu0 0
        %1302 = vmatprep.subr.bf16.mxu0 0
        %1303 = vmatpush1.bf16.msra.mxu0 0
        %1304 = vmatprep.subr.bf16.mxu0 0
        %1305 = vmatpush1.bf16.msra.mxu0 0
        %1306 = vmatprep.subr.bf16.mxu0 0
        %1307 = vmatpush1.bf16.msra.mxu0 0
        %1308 = vmatprep.subr.bf16.mxu0 0
        %1309 = vmatpush1.bf16.msra.mxu0 0
        %1310 = vmatprep.subr.bf16.mxu0 0
        %1311 = vmatpush1.bf16.msra.mxu0 0
        %1312 = vmatprep.subr.bf16.mxu0 0
        %1313 = vmatpush1.bf16.msra.mxu0 0
        %1314 = vmatprep.subr.bf16.mxu0 0
        %1315 = vmatpush1.bf16.msra.mxu0 0
        %1316 = vmatprep.subr.bf16.mxu0 0
        %1317 = vmatpush1.bf16.msra.mxu0 0
        %1318 = vmatprep.subr.bf16.mxu0 0
        %1319 = vmatpush1.bf16.msra.mxu0 0
        %1320 = vmatprep.subr.bf16.mxu0 0
        %1321 = vmatpush1.bf16.msra.mxu0 0
        %1322 = vmatprep.subr.bf16.mxu0 0
        %1323 = vmatpush1.bf16.msra.mxu0 0
        %1324 = vmatprep.subr.bf16.mxu0 0
        %1325 = vmatpush1.bf16.msra.mxu0 0
        %1326 = vmatprep.mubr.bf16.mxu0 0
        %1327 = vmatmul.mubr.bf16.gmra.mrb[0].mxu0 %v1289
        %v1328 = vpop.f32.mrb[0].mxu0
        %v1329 = vadd.f32 0.0, %v1328
        %v1330 = vpop.f32.mrb[0].mxu0
        %v1331 = vpop.f32.mrb[0].mxu0
        %v1332 = vpop.f32.mrb[0].mxu0
        %1333 = vdwg.mxu0
        %1335 = vrot.lane.b32.xlu0 %v1329, 24
        %v1336 = vpop.permute.xlu0 %1335
        %vm1338 = vcmask 261312
        %1339 = vst.msk [vmem:[#allocation3] sm:$0xff] %vm1338, %v1336
        %v1340 = vld [vmem:[#allocation3] sm:$0xff]
        %v1341 = vpack.c.bf16 %v1340, %v1340
        %v1342 = vld [vmem:[%s708] sm:$0xf]
        %v1343 = vld [vmem:[%s708 + $0x4] sm:$0xf]
        %v1344 = vld [vmem:[%s708 + $0x8] sm:$0xf]
        %v1345 = vld [vmem:[%s708 + $0xc] sm:$0xf]
        %v1346 = vld [vmem:[%s711] sm:$0x1]
        %v1348 = vlaneseq
        %v1349 = vshrl.u32 %v1348, 7
        %v1350 = vsub.s32 0, %v1349
        %v1351 = vrot.slane %v1346, %v1350
        %v1357 = vunpack.c.l.b16 %v1342
        %v1358 = vunpack.c.l.b16 %v1343
        %v1359 = vunpack.c.l.b16 %v1344
        %v1360 = vunpack.c.l.b16 %v1345
        %v1361 = vpack.c.b16 %v1358, %v1357
        %v1362 = vpack.c.b16 %v1360, %v1359
        %v1366 = vsel %vm734, %v1341, 0
        %1368 = vmatprep.subr.bf16.mxu0 0
        %1369 = vmatpush1.bf16.msra.mxu0 %v1361
        %1370 = vmatprep.subr.bf16.mxu0 0
        %1371 = vmatpush1.bf16.msra.mxu0 %v1362
        %1372 = vmatprep.subr.bf16.mxu0 0
        %1373 = vmatpush1.bf16.msra.mxu0 0
        %1374 = vmatprep.subr.bf16.mxu0 0
        %1375 = vmatpush1.bf16.msra.mxu0 0
        %1376 = vmatprep.subr.bf16.mxu0 0
        %1377 = vmatpush1.bf16.msra.mxu0 0
        %1378 = vmatprep.subr.bf16.mxu0 0
        %1379 = vmatpush1.bf16.msra.mxu0 0
        %1380 = vmatprep.subr.bf16.mxu0 0
        %1381 = vmatpush1.bf16.msra.mxu0 0
        %1382 = vmatprep.subr.bf16.mxu0 0
        %1383 = vmatpush1.bf16.msra.mxu0 0
        %1384 = vmatprep.subr.bf16.mxu0 0
        %1385 = vmatpush1.bf16.msra.mxu0 0
        %1386 = vmatprep.subr.bf16.mxu0 0
        %1387 = vmatpush1.bf16.msra.mxu0 0
        %1388 = vmatprep.subr.bf16.mxu0 0
        %1389 = vmatpush1.bf16.msra.mxu0 0
        %1390 = vmatprep.subr.bf16.mxu0 0
        %1391 = vmatpush1.bf16.msra.mxu0 0
        %1392 = vmatprep.subr.bf16.mxu0 0
        %1393 = vmatpush1.bf16.msra.mxu0 0
        %1394 = vmatprep.subr.bf16.mxu0 0
        %1395 = vmatpush1.bf16.msra.mxu0 0
        %1396 = vmatprep.subr.bf16.mxu0 0
        %1397 = vmatpush1.bf16.msra.mxu0 0
        %1398 = vmatprep.subr.bf16.mxu0 0
        %1399 = vmatpush1.bf16.msra.mxu0 0
        %1400 = vmatprep.mubr.bf16.mxu0 0
        %1401 = vmatmul.mubr.bf16.gmra.mrb[0].mxu0 %v1366
        %v1402 = vpop.f32.mrb[0].mxu0
        %v1403 = vadd.f32 %v1351, %v1402
        %v1404 = vpop.f32.mrb[0].mxu0
        %v1405 = vpop.f32.mrb[0].mxu0
        %v1406 = vpop.f32.mrb[0].mxu0
        %1407 = vdwg.mxu0
        %v1408 = vadd.f32 %v731, %v1403
        %v1409 = vld [vmem:[%s714] sm:$0x1]
        %v1410 = vld [vmem:[%s580] sm:$0x1]
        %v1411 = vsel %vm734, %v1408, 0.0
        %1412 = vadd.xlane.f32.xlu0 %v1411
        %v1413 = vpop.xlane.xlu0 %1412
        %v1414 = vmul.f32 %v1413, %v738
        %v1415 = vsub.f32 %v1408, %v1414
        %v1416 = vmul.f32 %v1415, %v1415
        %v1417 = vsel %vm734, %v1416, 0.0
        %1418 = vadd.xlane.f32.xlu0 %v1417
        %v1419 = vpop.xlane.xlu0 %1418
        %v1420 = vmul.f32 %v1419, %v738
        %v1421 = vadd.f32 %v1420, 1e-05
        %v1422 = vrsqrt.pop %v1421
        %v1423 = vmul.f32 %v1415, %v1422
        %v1425 = vlaneseq
        %v1426 = vshrl.u32 %v1425, 7
        %v1427 = vsub.s32 0, %v1426
        %v1428 = vrot.slane %v1409, %v1427
        %v1430 = vmul.f32 %v1423, %v1428
        %v1432 = vlaneseq
        %v1433 = vshrl.u32 %v1432, 7
        %v1434 = vsub.s32 0, %v1433
        %v1435 = vrot.slane %v1410, %v1434
        %v1437 = vadd.f32 %v1430, %v1435
        %v1438 = vpack.c.bf16 %v1437, %v1437
        %v1439 = vld [vmem:[%s589] sm:$0xf]
        %v1440 = vld [vmem:[%s589 + $0x4] sm:$0xf]
        %v1441 = vld [vmem:[%s589 + $0x8] sm:$0xf]
        %v1442 = vld [vmem:[%s589 + $0xc] sm:$0xf]
        %v1443 = vld [vmem:[%s597] sm:$0x1]
        %v1445 = vlaneseq
        %v1446 = vshrl.u32 %v1445, 7
        %v1447 = vsub.s32 0, %v1446
        %v1448 = vrot.slane %v1443, %v1447
        %v1454 = vunpack.c.l.b16 %v1439
        %v1455 = vunpack.c.l.b16 %v1440
        %v1456 = vunpack.c.l.b16 %v1441
        %v1457 = vunpack.c.l.b16 %v1442
        %v1458 = vpack.c.b16 %v1455, %v1454
        %v1459 = vpack.c.b16 %v1457, %v1456
        %v1463 = vsel %vm734, %v1438, 0
        %1465 = vmatprep.subr.bf16.mxu0 0
        %1466 = vmatpush1.bf16.msra.mxu0 %v1458
        %1467 = vmatprep.subr.bf16.mxu0 0
        %1468 = vmatpush1.bf16.msra.mxu0 %v1459
        %1469 = vmatprep.subr.bf16.mxu0 0
        %1470 = vmatpush1.bf16.msra.mxu0 0
        %1471 = vmatprep.subr.bf16.mxu0 0
        %1472 = vmatpush1.bf16.msra.mxu0 0
        %1473 = vmatprep.subr.bf16.mxu0 0
        %1474 = vmatpush1.bf16.msra.mxu0 0
        %1475 = vmatprep.subr.bf16.mxu0 0
        %1476 = vmatpush1.bf16.msra.mxu0 0
        %1477 = vmatprep.subr.bf16.mxu0 0
        %1478 = vmatpush1.bf16.msra.mxu0 0
        %1479 = vmatprep.subr.bf16.mxu0 0
        %1480 = vmatpush1.bf16.msra.mxu0 0
        %1481 = vmatprep.subr.bf16.mxu0 0
        %1482 = vmatpush1.bf16.msra.mxu0 0
        %1483 = vmatprep.subr.bf16.mxu0 0
        %1484 = vmatpush1.bf16.msra.mxu0 0
        %1485 = vmatprep.subr.bf16.mxu0 0
        %1486 = vmatpush1.bf16.msra.mxu0 0
        %1487 = vmatprep.subr.bf16.mxu0 0
        %1488 = vmatpush1.bf16.msra.mxu0 0
        %1489 = vmatprep.subr.bf16.mxu0 0
        %1490 = vmatpush1.bf16.msra.mxu0 0
        %1491 = vmatprep.subr.bf16.mxu0 0
        %1492 = vmatpush1.bf16.msra.mxu0 0
        %1493 = vmatprep.subr.bf16.mxu0 0
        %1494 = vmatpush1.bf16.msra.mxu0 0
        %1495 = vmatprep.subr.bf16.mxu0 0
        %1496 = vmatpush1.bf16.msra.mxu0 0
        %1497 = vmatprep.mubr.bf16.mxu0 0
        %1498 = vmatmul.mubr.bf16.gmra.mrb[0].mxu0 %v1463
        %v1499 = vpop.f32.mrb[0].mxu0
        %v1500 = vadd.f32 %v1448, %v1499
        %v1501 = vpop.f32.mrb[0].mxu0
        %v1502 = vpop.f32.mrb[0].mxu0
        %v1503 = vpop.f32.mrb[0].mxu0
        %1504 = vdwg.mxu0
        %v1505 = vmax.f32 %v1500, 0.0
        %v1506 = vpack.c.bf16 %v1505, %v1505
        %v1507 = vld [vmem:[%s719] sm:$0xf]
        %v1508 = vld [vmem:[%s719 + $0x4] sm:$0xf]
        %v1509 = vld [vmem:[%s719 + $0x8] sm:$0xf]
        %v1510 = vld [vmem:[%s719 + $0xc] sm:$0xf]
        %v1511 = vld [vmem:[%s719 + $0x10] sm:$0xf]
        %v1512 = vld [vmem:[%s719 + $0x14] sm:$0xf]
        %v1513 = vld [vmem:[%s719 + $0x18] sm:$0xf]
        %v1514 = vld [vmem:[%s719 + $0x1c] sm:$0xf]
        %v1515 = vld [vmem:[%s722] sm:$0x1]
        %v1517 = vlaneseq
        %v1518 = vshrl.u32 %v1517, 7
        %v1519 = vsub.s32 0, %v1518
        %v1520 = vrot.slane %v1515, %v1519
        %v1530 = vunpack.c.l.b16 %v1507
        %v1531 = vunpack.c.l.b16 %v1508
        %v1532 = vunpack.c.l.b16 %v1509
        %v1533 = vunpack.c.l.b16 %v1510
        %v1534 = vunpack.c.l.b16 %v1511
        %v1535 = vunpack.c.l.b16 %v1512
        %v1536 = vunpack.c.l.b16 %v1513
        %v1537 = vunpack.c.l.b16 %v1514
        %v1538 = vpack.c.b16 %v1531, %v1530
        %v1539 = vpack.c.b16 %v1533, %v1532
        %v1540 = vpack.c.b16 %v1535, %v1534
        %v1541 = vpack.c.b16 %v1537, %v1536
        %vm1546 = vcmask 523264
        %v1548 = vsel %vm1546, %v1506, 0
        %1550 = vmatprep.subr.bf16.mxu0 0
        %1551 = vmatpush1.bf16.msra.mxu0 %v1538
        %1552 = vmatprep.subr.bf16.mxu0 0
        %1553 = vmatpush1.bf16.msra.mxu0 %v1539
        %1554 = vmatprep.subr.bf16.mxu0 0
        %1555 = vmatpush1.bf16.msra.mxu0 %v1540
        %1556 = vmatprep.subr.bf16.mxu0 0
        %1557 = vmatpush1.bf16.msra.mxu0 %v1541
        %1558 = vmatprep.subr.bf16.mxu0 0
        %1559 = vmatpush1.bf16.msra.mxu0 0
        %1560 = vmatprep.subr.bf16.mxu0 0
        %1561 = vmatpush1.bf16.msra.mxu0 0
        %1562 = vmatprep.subr.bf16.mxu0 0
        %1563 = vmatpush1.bf16.msra.mxu0 0
        %1564 = vmatprep.subr.bf16.mxu0 0
        %1565 = vmatpush1.bf16.msra.mxu0 0
        %1566 = vmatprep.subr.bf16.mxu0 0
        %1567 = vmatpush1.bf16.msra.mxu0 0
        %1568 = vmatprep.subr.bf16.mxu0 0
        %1569 = vmatpush1.bf16.msra.mxu0 0
        %1570 = vmatprep.subr.bf16.mxu0 0
        %1571 = vmatpush1.bf16.msra.mxu0 0
        %1572 = vmatprep.subr.bf16.mxu0 0
        %1573 = vmatpush1.bf16.msra.mxu0 0
        %1574 = vmatprep.subr.bf16.mxu0 0
        %1575 = vmatpush1.bf16.msra.mxu0 0
        %1576 = vmatprep.subr.bf16.mxu0 0
        %1577 = vmatpush1.bf16.msra.mxu0 0
        %1578 = vmatprep.subr.bf16.mxu0 0
        %1579 = vmatpush1.bf16.msra.mxu0 0
        %1580 = vmatprep.subr.bf16.mxu0 0
        %1581 = vmatpush1.bf16.msra.mxu0 0
        %1582 = vmatprep.mubr.bf16.mxu0 0
        %1583 = vmatmul.mubr.bf16.gmra.mrb[0].mxu0 %v1548
        %v1584 = vpop.f32.mrb[0].mxu0
        %v1585 = vadd.f32 %v1520, %v1584
        %v1586 = vpop.f32.mrb[0].mxu0
        %v1587 = vpop.f32.mrb[0].mxu0
        %v1588 = vpop.f32.mrb[0].mxu0
        %1589 = vdwg.mxu0
        %v1590 = vadd.f32 %v1408, %v1585
        %1591 = vst.msk [vmem:[#allocation2] sm:$0xff] %vm734, %v1590
        %p1592 = scmp.eq.s32.totalorder %s41, 1
        // Predicated region
        $region93: #{tpu_custom_call.1} parent=71 // pred_check
          %p1593 = pneg %p1592
        $region94: #{tpu_custom_call.1} parent=71 // pred_check_branch
          %1595 = sbr.rel (%p1593) target = $region96
        $region95: #{tpu_custom_call.1} parent=71 // pred_region
          %v1596 = vld [vmem:[#allocation2] sm:$0xff]
          %1597 = vst.msk [vmem:[%s687] sm:$0xff] %vm734, %v1596
        $region96: #{tpu_custom_call.1} parent=71 // pred_fallthru
          _
        %s1598 = sand.u32 %s394, 1
        %s1599 = scalar_lea.sflag [#allocation6], %s1598
        %s1600 = sand.u32 %s394, 1
        %s1601 = smul.addr %s1600, 8
        %s1602 = scalar_lea.vmem [#allocation12], %s1601
        // Predicated region
        $region97: #{tpu_custom_call.1} parent=71 // pred_check
          %p1603 = pneg %p404
        $region98: #{tpu_custom_call.1} parent=71 // pred_check_branch
          %1605 = sbr.rel (%p1603) target = $region100
        $region99: #{tpu_custom_call.1} parent=71 // pred_region
          %s1607 = ssub.s32 128, 128
          %1608 = vsyncadd %s1599, %s1607
          %s1609 = smul.addr %s40, 128
          %s1610 = scalar_lea.hbm %s13, %s1609
          %s1612 = sshll.u32 %s1602, 4
          %s1613 = int_to_ptr.vmem [resolvable:$true] %s1612
          %1615 = dma.vmem_to_hbm [thread:$0]  %s1613, 128, %s1610, %s1599
        $region100: #{tpu_custom_call.1} parent=71 // pred_fallthru
          _
      $region72: #{tpu_custom_call.1} parent=5 // pred_fallthru
        _
      %p1616 = scmp.le.s32.totalorder 2, %s31
      // Predicated region
      $region101: #{tpu_custom_call.1} parent=5 // pred_check
        %p1617 = pneg %p1616
      $region102: #{tpu_custom_call.1} parent=5 // pred_check_branch
        %1619 = sbr.rel (%p1617) target = $region104
      $region103: #{tpu_custom_call.1} parent=5 // pred_region
        %s1620 = ssub.s32 %s31, 2
        // Predicated region
        $region105: #{tpu_custom_call.1} parent=103 // pred_check
          %p1621 = pneg %p410
        $region106: #{tpu_custom_call.1} parent=103 // pred_check_branch
          %1623 = sbr.rel (%p1621) target = $region108
        $region107: #{tpu_custom_call.1} parent=103 // pred_region
          %s1624 = sand.u32 %s395, 1
          %s1625 = scalar_lea.sflag [#allocation6], %s1624
          %s1626 = sand.u32 %s395, 1
          %s1627 = smul.addr %s1626, 8
          %s1628 = scalar_lea.vmem [#allocation12], %s1627
          %1629 = dma.done %s1625, 128
        $region108: #{tpu_custom_call.1} parent=103 // pred_fallthru
          _
      $region104: #{tpu_custom_call.1} parent=5 // pred_fallthru
        _
    $region6: #{tpu_custom_call.1} parent=1 // loop_footer
      %s35 = sadd.s32 1, %s31
    $region7: #{tpu_custom_call.1} parent=1 // loop_footer_branch
      %30 = sbr.rel target = $region3
    $region8: #{tpu_custom_call.1} parent=1 // loop_exit
      _
    %1630 = vsyncpa [#allocation5], 1
    %s1631 = scalar_lea.sflag [#allocation5], 1
    %1632 = vsyncpa %s1631, 1
    %1633 = vsyncpa [#allocation8], 1
    %s1634 = scalar_lea.sflag [#allocation8], 1
    %1635 = vsyncpa %s1634, 1
    %1636 = vsyncpa [#allocation11], 1
    %s1637 = scalar_lea.sflag [#allocation11], 1
    %1638 = vsyncpa %s1637, 1
    %1639 = vsyncpa [#allocation6], 1
    %s1640 = scalar_lea.sflag [#allocation6], 1
    %1641 = vsyncpa %s1640, 1

</llo_original>
